<compile_context>
chip_gen: v5e
topology: v5e:2x2
jax: 0.10.0
libtpu: 0.0.40
codegen_flags: <defaults>
</compile_context>

<pallas_src>
import functools
import numpy as np

import jax
import jax.numpy as jnp
from jax import lax
from jax.experimental import pallas as pl
from jax.experimental.pallas import tpu as pltpu


# --------------------------------------------------------------------------
# Shared helpers
# --------------------------------------------------------------------------

def _cparams(*sems):
    return pltpu.CompilerParams(
        dimension_semantics=sems,
        vmem_limit_bytes=48 * 1024 * 1024,   # within v7x's 64 MiB, above v5e default
    )


def _full_spec(shape):
    nd = len(shape)
    return pl.BlockSpec(shape, lambda i, nd=nd: (0,) * nd)


# --------------------------------------------------------------------------
# conv1: 3x3 stride-2 conv as a K=27 GEMM on the phase-decomposed im2col input,
# writing straight into conv2's padded phase layout.
# --------------------------------------------------------------------------

def _conv1_kernel(x_ref, v_ref, w_ref, b_ref, o_ref, *, rows):
    # x: (rows, ww2, 27) bf16   v: (rows, ww2, 1) f32 (pad-ring mask)
    # w: (27, C) bf16           b: (1, C) f32         o: (rows, ww2, C) bf16
    for j in range(rows):
        acc = jnp.dot(x_ref[j], w_ref[...], preferred_element_type=jnp.float32)
        o_ref[j] = (jnp.maximum(acc + b_ref[...], 0.0) * v_ref[j]).astype(o_ref.dtype)


def conv1_phase_gemm(x_ph, valid_ph, w, b, *, tile_rows=8):
    """x_ph: (B, 2, 2, hh2p, ww2, 27) bf16 phase-ordered im2col (ring rows are zero).
    valid_ph: (2, 2, hh2p, ww2, 1) f32 interior mask (zero on the conv-pad ring).
    Returns Y: (B, 2, hh2p, ww2, 2*C) bf16 — conv1 output already in the padded,
    phase-grouped layout conv2 reads (dim1 = column parity g, channel halves = row
    parity)."""
    B, _, _, hh2p, ww2, kin = x_ph.shape
    c = w.shape[-1]
    assert hh2p % tile_rows == 0
    nt = hh2p // tile_rows
    return pl.pallas_call(
        functools.partial(_conv1_kernel, rows=tile_rows),
        out_shape=jax.ShapeDtypeStruct((B, 2, hh2p, ww2, 2 * c), jnp.bfloat16),
        grid=(B, 2, 2, nt),
        in_specs=[
            pl.BlockSpec((None, None, None, tile_rows, ww2, kin),
                         lambda bb, hf, g, i: (bb, hf, g, i, 0, 0)),
            pl.BlockSpec((None, None, tile_rows, ww2, 1),
                         lambda bb, hf, g, i: (hf, g, i, 0, 0)),
            pl.BlockSpec((kin, c), lambda bb, hf, g, i: (0, 0)),
            pl.BlockSpec((1, c), lambda bb, hf, g, i: (0, 0)),
        ],
        out_specs=pl.BlockSpec((None, None, tile_rows, ww2, c),
                               lambda bb, hf, g, i: (bb, g, i, 0, hf)),
        compiler_params=_cparams("parallel", "parallel", "parallel", "parallel"),
    )(x_ph, valid_ph, w, b)


# --------------------------------------------------------------------------
# conv2: implicit-GEMM 3x3 stride-2 conv over the phase-grouped conv1 output,
# tiled over output rows with a +1-row halo provided by TRy+1 row BlockSpecs.
# --------------------------------------------------------------------------

def _conv2_kernel(*refs, rows, ow):
    row_refs = refs[:rows + 1]                      # each: (2, ww2, 2*C) bf16
    wa_ref, wb_ref, b_ref, o_ref, acc_ref = refs[rows + 1:]
    half = wb_ref.shape[1]                          # C (=128)
    for j in range(rows):
        rj = row_refs[j]          # output row j needs input phase-rows j and j+1
        rn = row_refs[j + 1]
        # 3 K=2C dots cover the kh in {0,1} taps (channel halves = kh parity):
        acc_ref[...] = jnp.dot(rj[0, 0:ow, :], wa_ref[0],
                               preferred_element_type=jnp.float32)       # taps (0,0)+(1,0)
        acc_ref[...] += jnp.dot(rj[1, 0:ow, :], wa_ref[1],
                                preferred_element_type=jnp.float32)      # taps (0,1)+(1,1)
        acc_ref[...] += jnp.dot(rj[0, 1:ow + 1, :], wa_ref[2],
                                preferred_element_type=jnp.float32)      # taps (0,2)+(1,2)
        # 3 K=C dots for the kh=2 taps (row halo):
        acc_ref[...] += jnp.dot(rn[0, 0:ow, 0:half], wb_ref[0],
                                preferred_element_type=jnp.float32)      # tap (2,0)
        acc_ref[...] += jnp.dot(rn[1, 0:ow, 0:half], wb_ref[1],
                                preferred_element_type=jnp.float32)      # tap (2,1)
        acc_ref[...] += jnp.dot(rn[0, 1:ow + 1, 0:half], wb_ref[2],
                                preferred_element_type=jnp.float32)      # tap (2,2)
        o_ref[j] = jnp.maximum(acc_ref[...] + b_ref[...], 0.0).astype(o_ref.dtype)


def conv2_phase_gemm(y, wa, wb, b, oh2, *, row_tile=8):
    """y: (B, 2, hh2p, ww2, 2*C) bf16 (conv1 output, padded phase layout).
    wa: (3, 2*C, N) packed [W(0,kw); W(1,kw)]; wb: (3, C, N) = W(2,kw); b: (1, N).
    Returns (B, oh2, ow2, N) bf16 with ReLU applied."""
    B, _, hh2p, ww2, c2 = y.shape
    ow2 = ww2 - 1
    n = wa.shape[-1]
    rows = max(r for r in (8, 4, 2, 1) if oh2 % r == 0 and r <= row_tile)

    def _row_spec(j):
        return pl.BlockSpec((None, 2, None, ww2, c2),
                            lambda bb, i: (bb, 0, i * rows + j, 0, 0))

    in_specs = [_row_spec(j) for j in range(rows + 1)]
    in_specs += [
        pl.BlockSpec(wa.shape, lambda bb, i: (0, 0, 0)),
        pl.BlockSpec(wb.shape, lambda bb, i: (0, 0, 0)),
        pl.BlockSpec((1, n), lambda bb, i: (0, 0)),
    ]
    return pl.pallas_call(
        functools.partial(_conv2_kernel, rows=rows, ow=ow2),
        out_shape=jax.ShapeDtypeStruct((B, oh2, ow2, n), jnp.bfloat16),
        grid=(B, oh2 // rows),
        in_specs=in_specs,
        out_specs=pl.BlockSpec((None, rows, ow2, n), lambda bb, i: (bb, i, 0, 0)),
        scratch_shapes=[pltpu.VMEM((ow2, n), jnp.float32)],
        compiler_params=_cparams("parallel", "parallel"),
    )(*([y] * (rows + 1)), wa, wb, b)


# --------------------------------------------------------------------------
# Generic tiled matmul (+bias, +optional ReLU), bf16 operands / f32 accumulator.
# --------------------------------------------------------------------------

def _matmul_kernel(x_ref, w_ref, b_ref, o_ref, acc_ref, *, act):
    @pl.when(pl.program_id(2) == 0)
    def _():
        acc_ref[...] = jnp.zeros_like(acc_ref)

    acc_ref[...] += jnp.dot(x_ref[...], w_ref[...], preferred_element_type=jnp.float32)

    @pl.when(pl.program_id(2) == pl.num_programs(2) - 1)
    def _():
        r = acc_ref[...] + b_ref[...]
        if act == "relu":
            r = jnp.maximum(r, 0.0)
        o_ref[...] = r.astype(o_ref.dtype)


def matmul_bias_act(x, w, b, act="none", *, tm=256, tn=256, tk=512):
    """(M, K) @ (K, N) + b.  Dims are padded to tile multiples (no silent whole-matrix
    fallback), K axis is 'arbitrary' with an f32 VMEM accumulator."""
    M, K = x.shape
    _, N = w.shape

    def rup(a, m):
        return -(-a // m) * m

    tm = min(tm, rup(M, 8))
    tn = min(tn, rup(N, 128))
    tk = min(tk, rup(K, 128))
    Mp, Kp, Np = rup(M, tm), rup(K, tk), rup(N, tn)
    xp = jnp.pad(x, ((0, Mp - M), (0, Kp - K))).astype(jnp.bfloat16)
    wp = jnp.pad(w, ((0, Kp - K), (0, Np - N))).astype(jnp.bfloat16)
    bp = jnp.pad(b.reshape(1, N).astype(jnp.float32), ((0, 0), (0, Np - N)))

    out = pl.pallas_call(
        functools.partial(_matmul_kernel, act=act),
        out_shape=jax.ShapeDtypeStruct((Mp, Np), jnp.float32),
        grid=(Mp // tm, Np // tn, Kp // tk),
        in_specs=[
            pl.BlockSpec((tm, tk), lambda i, j, k: (i, k)),
            pl.BlockSpec((tk, tn), lambda i, j, k: (k, j)),
            pl.BlockSpec((1, tn), lambda i, j, k: (0, j)),
        ],
        out_specs=pl.BlockSpec((tm, tn), lambda i, j, k: (i, j)),
        scratch_shapes=[pltpu.VMEM((tm, tn), jnp.float32)],
        compiler_params=_cparams("parallel", "parallel", "arbitrary"),
    )(xp, wp, bp)
    return out[:M, :N]


# --------------------------------------------------------------------------
# Masked (weighted) mean pooling, tiled over the region/token axis.
# --------------------------------------------------------------------------

def _masked_pool_kernel(x_ref, pv_ref, o_ref):
    @pl.when(pl.program_id(1) == 0)
    def _():
        o_ref[...] = jnp.zeros_like(o_ref)
    o_ref[...] += jnp.sum(x_ref[...].astype(jnp.float32) * pv_ref[...],
                          axis=0, keepdims=True)


def _pool_tile_rows(r, cap=2048):
    if r <= cap:
        return r
    for t in range(cap - cap % 8, 7, -8):
        if r % t == 0:
            return t
    return r


def masked_pool(x, pv):
    """x: (B, R, D); pv: (B, R, 1) f32 pre-normalized weights (mask / count).
    Returns (B, D) f32 = sum_r pv[b, r] * x[b, r, :] (== masked mean)."""
    B, R, D = x.shape
    tr = _pool_tile_rows(R)
    assert R % tr == 0
    out = pl.pallas_call(
        _masked_pool_kernel,
        out_shape=jax.ShapeDtypeStruct((B, 1, D), jnp.float32),
        grid=(B, R // tr),
        in_specs=[
            pl.BlockSpec((None, tr, D), lambda bb, k: (bb, k, 0)),
            pl.BlockSpec((None, tr, 1), lambda bb, k: (bb, k, 0)),
        ],
        out_specs=pl.BlockSpec((None, 1, D), lambda bb, k: (bb, 0, 0)),
        compiler_params=_cparams("parallel", "arbitrary"),
    )(x, pv)
    return out.reshape(B, D)


# --------------------------------------------------------------------------
# Fused grounding-head tail: project pooled vectors + cosine similarity.
# (Pooling commutes with the linear projections, so only the pooled vectors are
#  projected; the pooled bias contribution is gated by the 0/1 pool sums.)
# --------------------------------------------------------------------------

def _head_kernel(pf_ref, ploc_ref, pc_ref, sv_ref, sl_ref,
                 wvf_ref, wvl_ref, bv_ref, wl_ref, bl_ref,
                 sim_ref, vp_ref, lp_ref):
    v = (jnp.dot(pf_ref[...], wvf_ref[...], preferred_element_type=jnp.float32)
         + jnp.dot(ploc_ref[...], wvl_ref[...], preferred_element_type=jnp.float32)
         + sv_ref[...] * bv_ref[...])
    l = (jnp.dot(pc_ref[...], wl_ref[...], preferred_element_type=jnp.float32)
         + sl_ref[...] * bl_ref[...])
    vn = v * lax.rsqrt(jnp.maximum(jnp.sum(v * v, axis=-1, keepdims=True), 1e-12))
    ln = l * lax.rsqrt(jnp.maximum(jnp.sum(l * l, axis=-1, keepdims=True), 1e-12))
    sim_ref[...] = lax.dot_general(vn, ln, (((1,), (1,)), ((), ())),
                                   preferred_element_type=jnp.float32)
    vp_ref[...] = v
    lp_ref[...] = l


def grounding_head(input_image, input_caption, params):
    feats = input_image["region_features"]                       # (B, R, Dv) bf16
    loc = input_image["region_loc"]                              # (B, R, 2) f32
    rmask = input_image["region_mask"].astype(jnp.float32)       # (B, R)
    cap = input_caption["input_embeddings"]                      # (B, T, Dl) f32
    cmask = input_caption["attention_mask"].astype(jnp.float32)  # (B, T)
    B = feats.shape[0]
    Dv = feats.shape[-1]
    Dl = cap.shape[-1]
    E = params["head_wv_feat"].shape[-1]

    rsum = jnp.sum(rmask, axis=-1, keepdims=True)
    csum = jnp.sum(cmask, axis=-1, keepdims=True)
    pv_r = (rmask / jnp.maximum(rsum, 1.0))[..., None]           # (B, R, 1)
    pv_c = (cmask / jnp.maximum(csum, 1.0))[..., None]           # (B, T, 1)
    sv = (rsum > 0).astype(jnp.float32)                          # (B, 1)
    sl = (csum > 0).astype(jnp.float32)

    pooled_feat = masked_pool(feats, pv_r)                       # (B, Dv)
    pooled_loc = masked_pool(loc, pv_r)                          # (B, 2)
    pooled_cap = masked_pool(cap, pv_c)                          # (B, Dl)

    sim, v_pool, l_pool = pl.pallas_call(
        _head_kernel,
        out_shape=(jax.ShapeDtypeStruct((B, B), jnp.float32),
                   jax.ShapeDtypeStruct((B, E), jnp.float32),
                   jax.ShapeDtypeStruct((B, E), jnp.float32)),
        grid=(1,),
        in_specs=[_full_spec((B, Dv)), _full_spec((B, 2)), _full_spec((B, Dl)),
                  _full_spec((B, 1)), _full_spec((B, 1)),
                  _full_spec((Dv, E)), _full_spec((2, E)), _full_spec((1, E)),
                  _full_spec((Dl, E)), _full_spec((1, E))],
        out_specs=(_full_spec((B, B)), _full_spec((B, E)), _full_spec((B, E))),
        compiler_params=_cparams("arbitrary"),
    )(pooled_feat, pooled_loc, pooled_cap, sv, sl,
      params["head_wv_feat"], params["head_wv_loc"], params["head_bv"],
      params["head_wl"], params["head_bl"])

    outputs = {
        "Grounding/image_caption_similarity": sim,
        "Grounding/pooled_visual": v_pool,
        "Grounding/pooled_language": l_pool,
    }
    losses = {}   # eval mode: MMSSGridModel returns outputs, not losses
    return outputs, losses


# --------------------------------------------------------------------------
# Synthetic sub-modules built on the Pallas kernels
# --------------------------------------------------------------------------

def visual_backbone(x_pad_nhwc, valid_hw, params):
    """Stand-in for cfg.build_backbone: two 3x3 stride-2 convs (implicit GEMM).
    Pixel normalization is applied to the 3-channel image before the im2col (the
    zero-padded region stays zero, matching ImageList padding after normalization).
    Returns {'res5': (B, gh, gw, v_dim) bf16 NHWC}."""
    B, H, W, _ = x_pad_nhwc.shape
    oh1, ow1 = H // 2, W // 2
    hh2, ww2 = oh1 // 2 + 1, ow1 // 2 + 1
    hh2p = -(-hh2 // 8) * 8
    oh2 = hh2 - 1

    mean = params["pixel_mean"].reshape(1, 1, 1, 3)
    istd = (1.0 / params["pixel_std"]).reshape(1, 1, 1, 3)      # multiply, not divide
    xn = (x_pad_nhwc - mean) * istd * valid_hw[..., None]

    # conv1 im2col: 9 stride-2 taps of the pad-1 image -> 27 channels (cheap at 3ch)
    xp = jnp.pad(xn, ((0, 0), (1, 1), (1, 1), (0, 0)))
    taps = [xp[:, kh:kh + 2 * oh1:2, kw:kw + 2 * ow1:2, :]
            for kh in range(3) for kw in range(3)]
    x1 = jnp.concatenate(taps, axis=-1)                          # (B, oh1, ow1, 27)

    # embed into conv2's padded phase grid: pad ring + split by (row, col) parity
    x1p = jnp.pad(x1, ((0, 0), (1, 1), (1, 1), (0, 0)))          # (B, oh1+2, ow1+2, 27)
    x1ph = x1p.reshape(B, hh2, 2, ww2, 2, 27).transpose(0, 2, 4, 1, 3, 5)
    x1ph = jnp.pad(x1ph, ((0, 0), (0, 0), (0, 0), (0, hh2p - hh2), (0, 0), (0, 0)))
    x1ph = x1ph.astype(jnp.bfloat16)                             # (B, 2, 2, hh2p, ww2, 27)

    vmap = jnp.zeros((oh1 + 2, ow1 + 2), jnp.float32).at[1:oh1 + 1, 1:ow1 + 1].set(1.0)
    vph = vmap.reshape(hh2, 2, ww2, 2).transpose(1, 3, 0, 2)
    vph = jnp.pad(vph, ((0, 0), (0, 0), (0, hh2p - hh2), (0, 0)))[..., None]

    # TODO(synk): conv1 -> conv2 still goes through one HBM pass of the bf16 phase
    # tensor; fully fusing both convs in one pallas_call (row-band VMEM intermediate)
    # is the remaining step.
    y = conv1_phase_gemm(x1ph, vph, params["conv1_w"], params["conv1_b"])
    res5 = conv2_phase_gemm(y, params["conv2_wa"], params["conv2_wb"],
                            params["conv2_b"], oh2)
    return {"res5": res5}                                         # NHWC grid features


def language_backbone(token_ids, token_mask, params):
    """Stand-in for cfg.build_language_backbone: embedding lookup + projection."""
    # TODO(synk): the token-embedding gather stays an XLA jnp.take (data-dependent
    # gather has no clean tiny-scale Pallas equivalent).
    emb = jnp.take(params["embed_table"], token_ids, axis=0)      # (B, T, l_dim)
    B, T, D = emb.shape
    proj = matmul_bias_act(emb.reshape(B * T, D), params["lang_w"],
                           params["lang_b"], act="relu").reshape(B, T, -1)
    return {"input_embeddings": proj,
            "attention_mask": token_mask.astype(jnp.float32)}


# --------------------------------------------------------------------------
# MMSSGridModel.forward (eval mode, spatial_dropout=0, mvm=False)
# --------------------------------------------------------------------------

def mmss_grid_model_forward(batched_inputs, params, *, size_divisibility=16):
    # ---- ImageList.from_tensors: pad images with zeros to a common divisible size.
    # TODO(synk): each distinct padded (image_h, image_w) recompiles the downstream
    # pallas_calls; production code should bucket sizes to a small fixed set.
    image_sizes = [tuple(x["image"].shape[-2:]) for x in batched_inputs]
    batch_size = len(batched_inputs)
    image_h = int(np.ceil(max(h for h, _ in image_sizes) / size_divisibility)
                  * size_divisibility)
    image_w = int(np.ceil(max(w for _, w in image_sizes) / size_divisibility)
                  * size_divisibility)

    x_pad = np.zeros([batch_size, image_h, image_w, 3], np.float32)
    valid = np.zeros([batch_size, image_h, image_w], np.float32)
    for i, x in enumerate(batched_inputs):
        h, w = image_sizes[i]
        img = np.asarray(x["image"], np.float32)                 # (3, h, w)
        x_pad[i, :h, :w, :] = img.transpose(1, 2, 0)
        valid[i, :h, :w] = 1.0

    # ---- visual backbone -> 'res5'
    features = visual_backbone(jnp.asarray(x_pad), jnp.asarray(valid), params)
    res5 = features["res5"]                                      # (B, gh, gw, dim)
    _, grid_h, grid_w, dim = res5.shape
    max_num_regions = grid_h * grid_w
    # == reshape([B, dim, R]).permute(0, 2, 1) of the reference NCHW tensor
    flattened_features = res5.reshape(batch_size, max_num_regions, dim)

    # ---- grid mask / grid locations (host-side numpy, exactly as reference)
    image_sizes_np = np.asarray(image_sizes, dtype=np.float32)
    grid_sizes = np.zeros(image_sizes_np.shape, dtype=np.int32)
    grid_sizes[:, 0] = np.ceil(image_sizes_np[:, 0] * grid_h / image_h)
    grid_sizes[:, 1] = np.ceil(image_sizes_np[:, 1] * grid_w / image_w)
    grid_mask = np.zeros([batch_size, grid_h, grid_w], dtype=np.uint8)
    for i in range(batch_size):
        grid_mask[i, :grid_sizes[i, 0], :grid_sizes[i, 1]] = 1
    flattened_mask = grid_mask.reshape([batch_size, max_num_regions])

    loc_x = np.zeros([batch_size, grid_h, grid_w], dtype=np.float32)
    loc_y = np.zeros([batch_size, grid_h, grid_w], dtype=np.float32)
    for i in range(batch_size):
        y = (np.arange(grid_sizes[i, 0], dtype=np.float32) + 0.5) / grid_sizes[i, 0]
        x = (np.arange(grid_sizes[i, 1], dtype=np.float32) + 0.5) / grid_sizes[i, 1]
        loc_x[i, :grid_sizes[i, 0], :grid_sizes[i, 1]] = x[None, :]
        loc_y[i, :grid_sizes[i, 0], :grid_sizes[i, 1]] = y[:, None]
    flattened_loc = np.stack([loc_x, loc_y], axis=-1).reshape(
        [batch_size, max_num_regions, 2])

    # TODO(synk): training-only spatial_dropout subsampling (np.random.shuffle) and
    # MASKED_VISUAL_MODELING (raises NotImplementedError) are skipped (eval mode).

    input_image = {
        "region_features": flattened_features,
        "region_mask": jnp.asarray(flattened_mask),
        "region_loc": jnp.asarray(flattened_loc),
        "mvm_mask": jnp.zeros((batch_size, max_num_regions), jnp.float32),
        "target_region_features": flattened_features,
    }

    # ---- language backbone on captions
    targets_tokens = jnp.stack([x["annotation"]["tokens"] for x in batched_inputs])
    targets_mask = jnp.stack([x["annotation"]["mask"] for x in batched_inputs])
    input_caption = language_backbone(targets_tokens, targets_mask, params)

    # ---- mmss heads (single grounding head)
    mmss_outputs = {}
    mmss_losses = {}
    o, l = grounding_head(input_image, input_caption, params)
    mmss_outputs.update(o)
    mmss_losses.update(l)

    # eval mode
    return mmss_outputs


# --------------------------------------------------------------------------
# Deterministic parameter init + example run
# --------------------------------------------------------------------------

def init_params(key, *, c_mid=128, v_dim=128, l_dim=128, emb=128, vocab=50):
    ks = jax.random.split(key, 8)
    s = 0.05
    w1 = jax.random.normal(ks[0], (3, 3, 3, c_mid), jnp.float32) * s      # (kh,kw,cin,co)
    w2 = jax.random.normal(ks[1], (3, 3, c_mid, v_dim), jnp.float32) * s
    # conv1: im2col weight, tap-major channel order (kh*3+kw)*3 + cin
    conv1_w = w1.reshape(27, c_mid)
    # conv2: K-packed per the kernel's tap grouping:
    #   wa[kw] = [W(0,kw); W(1,kw)] stacked along K (channel halves = kh parity)
    #   wb[kw] = W(2,kw)
    conv2_wa = jnp.stack([jnp.concatenate([w2[0, kw], w2[1, kw]], axis=0)
                          for kw in range(3)])                             # (3, 2C, N)
    conv2_wb = w2[2]                                                       # (3, C, N)
    return {
        "pixel_mean": jnp.asarray([103.53, 116.28, 123.675], jnp.float32),
        "pixel_std": jnp.asarray([57.375, 57.12, 58.395], jnp.float32),
        "conv1_w": conv1_w.astype(jnp.bfloat16),
        "conv1_b": jnp.zeros((1, c_mid), jnp.float32),
        "conv2_wa": conv2_wa.astype(jnp.bfloat16),
        "conv2_wb": conv2_wb.astype(jnp.bfloat16),
        "conv2_b": jnp.zeros((1, v_dim), jnp.float32),
        "embed_table": jax.random.normal(ks[2], (vocab, l_dim), jnp.float32) * s,
        "lang_w": jax.random.normal(ks[3], (l_dim, l_dim), jnp.float32) * s,
        "lang_b": jnp.zeros((l_dim,), jnp.float32),
        "head_wv_feat": jax.random.normal(ks[4], (v_dim, emb), jnp.float32) * s,
        "head_wv_loc": jax.random.normal(ks[5], (2, emb), jnp.float32) * s,
        "head_bv": jnp.zeros((1, emb), jnp.float32),
        "head_wl": jax.random.normal(ks[6], (l_dim, emb), jnp.float32) * s,
        "head_bl": jnp.zeros((1, emb), jnp.float32),
    }


if __name__ == "__main__":
    key = jax.random.PRNGKey(0)
    k_params, k_img1, k_img2, k_tok = jax.random.split(key, 4)
    params = init_params(k_params)

    # Two images of different sizes (NCHW, pixel values in [0, 255)).
    img1 = jax.random.uniform(k_img1, (3, 16, 16), jnp.float32, 0.0, 255.0)
    img2 = jax.random.uniform(k_img2, (3, 12, 14), jnp.float32, 0.0, 255.0)

    # Captions: token ids with per-caption valid lengths 8 and 5.
    seq_len = 8
    tokens = jax.random.randint(k_tok, (2, seq_len), 0, 50)
    tok_mask = jnp.asarray([[1.0] * 8, [1.0] * 5 + [0.0] * 3], jnp.float32)

    batched_inputs = [
        {"image": img1, "annotation": {"tokens": tokens[0], "mask": tok_mask[0]}},
        {"image": img2, "annotation": {"tokens": tokens[1], "mask": tok_mask[1]}},
    ]

    outputs = mmss_grid_model_forward(batched_inputs, params)
    jax.block_until_ready(outputs)
    assert outputs["Grounding/image_caption_similarity"].shape == (2, 2)
    assert outputs["Grounding/pooled_visual"].shape == (2, 128)
    assert outputs["Grounding/pooled_language"].shape == (2, 128)
    assert np.all(np.isfinite(np.asarray(outputs["Grounding/image_caption_similarity"])))
    assert np.all(np.isfinite(np.asarray(outputs["Grounding/pooled_visual"])))
    assert np.all(np.isfinite(np.asarray(outputs["Grounding/pooled_language"])))
    print("KERNEL_OK")
</pallas_src>

<mosaic_0001>
module attributes {stable_mosaic.version = 11 : i64} {
  func.func @_conv1_kernel(%arg0: i32, %arg1: i32, %arg2: i32, %arg3: i32, %arg4: memref<1x1x1x8x5x27xbf16, #tpu.memory_space<vmem>>, %arg5: memref<1x1x8x5x1xf32, #tpu.memory_space<vmem>>, %arg6: memref<27x128xbf16, #tpu.memory_space<vmem>>, %arg7: memref<1x128xf32, #tpu.memory_space<vmem>>, %arg8: memref<1x1x8x5x128xbf16, #tpu.memory_space<vmem>>) attributes {dimension_semantics = [#tpu.dimension_semantics<parallel>, #tpu.dimension_semantics<parallel>, #tpu.dimension_semantics<parallel>, #tpu.dimension_semantics<parallel>], iteration_bounds = array<i64: 2, 2, 2, 1>, scalar_prefetch = 0 : i64, scratch_operands = 0 : i64, tpu.core_type = #tpu.core_type<tc>, window_params = [{transform_indices = @transform_0, window_bounds = array<i64: 1, 1, 1, 8, 5, 27>}, {transform_indices = @transform_1, window_bounds = array<i64: 1, 1, 8, 5, 1>}, {pipeline_mode = #tpu.pipeline_mode<synchronous>, transform_indices = @transform_2, window_bounds = array<i64: 27, 128>}, {pipeline_mode = #tpu.pipeline_mode<synchronous>, transform_indices = @transform_3, window_bounds = array<i64: 1, 128>}, {transform_indices = @transform_4, window_bounds = array<i64: 1, 1, 8, 5, 128>}]} {
    %c0 = arith.constant 0 : index
    %c0_0 = arith.constant 0 : index
    %c0_1 = arith.constant 0 : index
    %c0_2 = arith.constant 0 : index
    %c0_3 = arith.constant 0 : index
    %c0_4 = arith.constant 0 : index
    %0 = vector.load %arg4[%c0, %c0_0, %c0_1, %c0_2, %c0_3, %c0_4] : memref<1x1x1x8x5x27xbf16, #tpu.memory_space<vmem>>, vector<1x1x1x1x5x27xbf16>
    %1 = vector.shape_cast %0 : vector<1x1x1x1x5x27xbf16> to vector<5x27xbf16>
    %c0_5 = arith.constant 0 : index
    %c0_6 = arith.constant 0 : index
    %2 = vector.load %arg6[%c0_5, %c0_6] : memref<27x128xbf16, #tpu.memory_space<vmem>>, vector<27x128xbf16>
    %cst = arith.constant dense<0.000000e+00> : vector<5x128xf32>
    %3 = tpu.matmul %1, %2, %cst {dimension_numbers = #tpu.dot_dimension_numbers<[1], [0], [0], [1], [0, 0, 1, 1], [], []>} : vector<5x27xbf16>, vector<27x128xbf16>, vector<5x128xf32> -> vector<5x128xf32>
    %c0_7 = arith.constant 0 : index
    %c0_8 = arith.constant 0 : index
    %4 = vector.load %arg7[%c0_7, %c0_8] : memref<1x128xf32, #tpu.memory_space<vmem>>, vector<1x128xf32>
    %5 = vector.broadcast %4 : vector<1x128xf32> to vector<5x128xf32>
    %6 = arith.addf %3, %5 : vector<5x128xf32>
    %cst_9 = arith.constant 0.000000e+00 : f32
    %7 = vector.broadcast %cst_9 : f32 to vector<5x128xf32>
    %8 = arith.maximumf %6, %7 : vector<5x128xf32>
    %c0_10 = arith.constant 0 : index
    %c0_11 = arith.constant 0 : index
    %c0_12 = arith.constant 0 : index
    %c0_13 = arith.constant 0 : index
    %c0_14 = arith.constant 0 : index
    %9 = vector.load %arg5[%c0_10, %c0_11, %c0_12, %c0_13, %c0_14] : memref<1x1x8x5x1xf32, #tpu.memory_space<vmem>>, vector<1x1x1x5x1xf32>
    %10 = vector.shape_cast %9 : vector<1x1x1x5x1xf32> to vector<5x1xf32>
    %11 = vector.broadcast %10 : vector<5x1xf32> to vector<5x128xf32>
    %12 = arith.mulf %8, %11 : vector<5x128xf32>
    %13 = arith.truncf %12 : vector<5x128xf32> to vector<5x128xbf16>
    %c0_15 = arith.constant 0 : index
    %c0_16 = arith.constant 0 : index
    %c0_17 = arith.constant 0 : index
    %c0_18 = arith.constant 0 : index
    %c0_19 = arith.constant 0 : index
    %14 = vector.load %arg8[%c0_15, %c0_16, %c0_17, %c0_18, %c0_19] : memref<1x1x8x5x128xbf16, #tpu.memory_space<vmem>>, vector<1x1x1x5x128xbf16>
    %15 = vector.shape_cast %14 : vector<1x1x1x5x128xbf16> to vector<5x128xbf16>
    %16 = vector.shape_cast %13 : vector<5x128xbf16> to vector<1x1x1x5x128xbf16>
    tpu.vector_store %arg8[%c0_15, %c0_16, %c0_17, %c0_18, %c0_19], %16 {strides = array<i32>} : memref<1x1x8x5x128xbf16, #tpu.memory_space<vmem>>, vector<1x1x1x5x128xbf16>,
    %c0_20 = arith.constant 0 : index
    %c0_21 = arith.constant 0 : index
    %c0_22 = arith.constant 0 : index
    %c1 = arith.constant 1 : index
    %c0_23 = arith.constant 0 : index
    %c0_24 = arith.constant 0 : index
    %17 = vector.load %arg4[%c0_20, %c0_21, %c0_22, %c1, %c0_23, %c0_24] : memref<1x1x1x8x5x27xbf16, #tpu.memory_space<vmem>>, vector<1x1x1x1x5x27xbf16>
    %18 = vector.shape_cast %17 : vector<1x1x1x1x5x27xbf16> to vector<5x27xbf16>
    %c0_25 = arith.constant 0 : index
    %c0_26 = arith.constant 0 : index
    %19 = vector.load %arg6[%c0_25, %c0_26] : memref<27x128xbf16, #tpu.memory_space<vmem>>, vector<27x128xbf16>
    %cst_27 = arith.constant dense<0.000000e+00> : vector<5x128xf32>
    %20 = tpu.matmul %18, %19, %cst_27 {dimension_numbers = #tpu.dot_dimension_numbers<[1], [0], [0], [1], [0, 0, 1, 1], [], []>} : vector<5x27xbf16>, vector<27x128xbf16>, vector<5x128xf32> -> vector<5x128xf32>
    %c0_28 = arith.constant 0 : index
    %c0_29 = arith.constant 0 : index
    %21 = vector.load %arg7[%c0_28, %c0_29] : memref<1x128xf32, #tpu.memory_space<vmem>>, vector<1x128xf32>
    %22 = vector.broadcast %21 : vector<1x128xf32> to vector<5x128xf32>
    %23 = arith.addf %20, %22 : vector<5x128xf32>
    %cst_30 = arith.constant 0.000000e+00 : f32
    %24 = vector.broadcast %cst_30 : f32 to vector<5x128xf32>
    %25 = arith.maximumf %23, %24 : vector<5x128xf32>
    %c0_31 = arith.constant 0 : index
    %c0_32 = arith.constant 0 : index
    %c1_33 = arith.constant 1 : index
    %c0_34 = arith.constant 0 : index
    %c0_35 = arith.constant 0 : index
    %26 = vector.load %arg5[%c0_31, %c0_32, %c1_33, %c0_34, %c0_35] : memref<1x1x8x5x1xf32, #tpu.memory_space<vmem>>, vector<1x1x1x5x1xf32>
    %27 = vector.shape_cast %26 : vector<1x1x1x5x1xf32> to vector<5x1xf32>
    %28 = vector.broadcast %27 : vector<5x1xf32> to vector<5x128xf32>
    %29 = arith.mulf %25, %28 : vector<5x128xf32>
    %30 = arith.truncf %29 : vector<5x128xf32> to vector<5x128xbf16>
    %c0_36 = arith.constant 0 : index
    %c0_37 = arith.constant 0 : index
    %c1_38 = arith.constant 1 : index
    %c0_39 = arith.constant 0 : index
    %c0_40 = arith.constant 0 : index
    %31 = vector.load %arg8[%c0_36, %c0_37, %c1_38, %c0_39, %c0_40] : memref<1x1x8x5x128xbf16, #tpu.memory_space<vmem>>, vector<1x1x1x5x128xbf16>
    %32 = vector.shape_cast %31 : vector<1x1x1x5x128xbf16> to vector<5x128xbf16>
    %33 = vector.shape_cast %30 : vector<5x128xbf16> to vector<1x1x1x5x128xbf16>
    tpu.vector_store %arg8[%c0_36, %c0_37, %c1_38, %c0_39, %c0_40], %33 {strides = array<i32>} : memref<1x1x8x5x128xbf16, #tpu.memory_space<vmem>>, vector<1x1x1x5x128xbf16>,
    %c0_41 = arith.constant 0 : index
    %c0_42 = arith.constant 0 : index
    %c0_43 = arith.constant 0 : index
    %c2 = arith.constant 2 : index
    %c0_44 = arith.constant 0 : index
    %c0_45 = arith.constant 0 : index
    %34 = vector.load %arg4[%c0_41, %c0_42, %c0_43, %c2, %c0_44, %c0_45] : memref<1x1x1x8x5x27xbf16, #tpu.memory_space<vmem>>, vector<1x1x1x1x5x27xbf16>
    %35 = vector.shape_cast %34 : vector<1x1x1x1x5x27xbf16> to vector<5x27xbf16>
    %c0_46 = arith.constant 0 : index
    %c0_47 = arith.constant 0 : index
    %36 = vector.load %arg6[%c0_46, %c0_47] : memref<27x128xbf16, #tpu.memory_space<vmem>>, vector<27x128xbf16>
    %cst_48 = arith.constant dense<0.000000e+00> : vector<5x128xf32>
    %37 = tpu.matmul %35, %36, %cst_48 {dimension_numbers = #tpu.dot_dimension_numbers<[1], [0], [0], [1], [0, 0, 1, 1], [], []>} : vector<5x27xbf16>, vector<27x128xbf16>, vector<5x128xf32> -> vector<5x128xf32>
    %c0_49 = arith.constant 0 : index
    %c0_50 = arith.constant 0 : index
    %38 = vector.load %arg7[%c0_49, %c0_50] : memref<1x128xf32, #tpu.memory_space<vmem>>, vector<1x128xf32>
    %39 = vector.broadcast %38 : vector<1x128xf32> to vector<5x128xf32>
    %40 = arith.addf %37, %39 : vector<5x128xf32>
    %cst_51 = arith.constant 0.000000e+00 : f32
    %41 = vector.broadcast %cst_51 : f32 to vector<5x128xf32>
    %42 = arith.maximumf %40, %41 : vector<5x128xf32>
    %c0_52 = arith.constant 0 : index
    %c0_53 = arith.constant 0 : index
    %c2_54 = arith.constant 2 : index
    %c0_55 = arith.constant 0 : index
    %c0_56 = arith.constant 0 : index
    %43 = vector.load %arg5[%c0_52, %c0_53, %c2_54, %c0_55, %c0_56] : memref<1x1x8x5x1xf32, #tpu.memory_space<vmem>>, vector<1x1x1x5x1xf32>
    %44 = vector.shape_cast %43 : vector<1x1x1x5x1xf32> to vector<5x1xf32>
    %45 = vector.broadcast %44 : vector<5x1xf32> to vector<5x128xf32>
    %46 = arith.mulf %42, %45 : vector<5x128xf32>
    %47 = arith.truncf %46 : vector<5x128xf32> to vector<5x128xbf16>
    %c0_57 = arith.constant 0 : index
    %c0_58 = arith.constant 0 : index
    %c2_59 = arith.constant 2 : index
    %c0_60 = arith.constant 0 : index
    %c0_61 = arith.constant 0 : index
    %48 = vector.load %arg8[%c0_57, %c0_58, %c2_59, %c0_60, %c0_61] : memref<1x1x8x5x128xbf16, #tpu.memory_space<vmem>>, vector<1x1x1x5x128xbf16>
    %49 = vector.shape_cast %48 : vector<1x1x1x5x128xbf16> to vector<5x128xbf16>
    %50 = vector.shape_cast %47 : vector<5x128xbf16> to vector<1x1x1x5x128xbf16>
    tpu.vector_store %arg8[%c0_57, %c0_58, %c2_59, %c0_60, %c0_61], %50 {strides = array<i32>} : memref<1x1x8x5x128xbf16, #tpu.memory_space<vmem>>, vector<1x1x1x5x128xbf16>,
    %c0_62 = arith.constant 0 : index
    %c0_63 = arith.constant 0 : index
    %c0_64 = arith.constant 0 : index
    %c3 = arith.constant 3 : index
    %c0_65 = arith.constant 0 : index
    %c0_66 = arith.constant 0 : index
    %51 = vector.load %arg4[%c0_62, %c0_63, %c0_64, %c3, %c0_65, %c0_66] : memref<1x1x1x8x5x27xbf16, #tpu.memory_space<vmem>>, vector<1x1x1x1x5x27xbf16>
    %52 = vector.shape_cast %51 : vector<1x1x1x1x5x27xbf16> to vector<5x27xbf16>
    %c0_67 = arith.constant 0 : index
    %c0_68 = arith.constant 0 : index
    %53 = vector.load %arg6[%c0_67, %c0_68] : memref<27x128xbf16, #tpu.memory_space<vmem>>, vector<27x128xbf16>
    %cst_69 = arith.constant dense<0.000000e+00> : vector<5x128xf32>
    %54 = tpu.matmul %52, %53, %cst_69 {dimension_numbers = #tpu.dot_dimension_numbers<[1], [0], [0], [1], [0, 0, 1, 1], [], []>} : vector<5x27xbf16>, vector<27x128xbf16>, vector<5x128xf32> -> vector<5x128xf32>
    %c0_70 = arith.constant 0 : index
    %c0_71 = arith.constant 0 : index
    %55 = vector.load %arg7[%c0_70, %c0_71] : memref<1x128xf32, #tpu.memory_space<vmem>>, vector<1x128xf32>
    %56 = vector.broadcast %55 : vector<1x128xf32> to vector<5x128xf32>
    %57 = arith.addf %54, %56 : vector<5x128xf32>
    %cst_72 = arith.constant 0.000000e+00 : f32
    %58 = vector.broadcast %cst_72 : f32 to vector<5x128xf32>
    %59 = arith.maximumf %57, %58 : vector<5x128xf32>
    %c0_73 = arith.constant 0 : index
    %c0_74 = arith.constant 0 : index
    %c3_75 = arith.constant 3 : index
    %c0_76 = arith.constant 0 : index
    %c0_77 = arith.constant 0 : index
    %60 = vector.load %arg5[%c0_73, %c0_74, %c3_75, %c0_76, %c0_77] : memref<1x1x8x5x1xf32, #tpu.memory_space<vmem>>, vector<1x1x1x5x1xf32>
    %61 = vector.shape_cast %60 : vector<1x1x1x5x1xf32> to vector<5x1xf32>
    %62 = vector.broadcast %61 : vector<5x1xf32> to vector<5x128xf32>
    %63 = arith.mulf %59, %62 : vector<5x128xf32>
    %64 = arith.truncf %63 : vector<5x128xf32> to vector<5x128xbf16>
    %c0_78 = arith.constant 0 : index
    %c0_79 = arith.constant 0 : index
    %c3_80 = arith.constant 3 : index
    %c0_81 = arith.constant 0 : index
    %c0_82 = arith.constant 0 : index
    %65 = vector.load %arg8[%c0_78, %c0_79, %c3_80, %c0_81, %c0_82] : memref<1x1x8x5x128xbf16, #tpu.memory_space<vmem>>, vector<1x1x1x5x128xbf16>
    %66 = vector.shape_cast %65 : vector<1x1x1x5x128xbf16> to vector<5x128xbf16>
    %67 = vector.shape_cast %64 : vector<5x128xbf16> to vector<1x1x1x5x128xbf16>
    tpu.vector_store %arg8[%c0_78, %c0_79, %c3_80, %c0_81, %c0_82], %67 {strides = array<i32>} : memref<1x1x8x5x128xbf16, #tpu.memory_space<vmem>>, vector<1x1x1x5x128xbf16>,
    %c0_83 = arith.constant 0 : index
    %c0_84 = arith.constant 0 : index
    %c0_85 = arith.constant 0 : index
    %c4 = arith.constant 4 : index
    %c0_86 = arith.constant 0 : index
    %c0_87 = arith.constant 0 : index
    %68 = vector.load %arg4[%c0_83, %c0_84, %c0_85, %c4, %c0_86, %c0_87] : memref<1x1x1x8x5x27xbf16, #tpu.memory_space<vmem>>, vector<1x1x1x1x5x27xbf16>
    %69 = vector.shape_cast %68 : vector<1x1x1x1x5x27xbf16> to vector<5x27xbf16>
    %c0_88 = arith.constant 0 : index
    %c0_89 = arith.constant 0 : index
    %70 = vector.load %arg6[%c0_88, %c0_89] : memref<27x128xbf16, #tpu.memory_space<vmem>>, vector<27x128xbf16>
    %cst_90 = arith.constant dense<0.000000e+00> : vector<5x128xf32>
    %71 = tpu.matmul %69, %70, %cst_90 {dimension_numbers = #tpu.dot_dimension_numbers<[1], [0], [0], [1], [0, 0, 1, 1], [], []>} : vector<5x27xbf16>, vector<27x128xbf16>, vector<5x128xf32> -> vector<5x128xf32>
    %c0_91 = arith.constant 0 : index
    %c0_92 = arith.constant 0 : index
    %72 = vector.load %arg7[%c0_91, %c0_92] : memref<1x128xf32, #tpu.memory_space<vmem>>, vector<1x128xf32>
    %73 = vector.broadcast %72 : vector<1x128xf32> to vector<5x128xf32>
    %74 = arith.addf %71, %73 : vector<5x128xf32>
    %cst_93 = arith.constant 0.000000e+00 : f32
    %75 = vector.broadcast %cst_93 : f32 to vector<5x128xf32>
    %76 = arith.maximumf %74, %75 : vector<5x128xf32>
    %c0_94 = arith.constant 0 : index
    %c0_95 = arith.constant 0 : index
    %c4_96 = arith.constant 4 : index
    %c0_97 = arith.constant 0 : index
    %c0_98 = arith.constant 0 : index
    %77 = vector.load %arg5[%c0_94, %c0_95, %c4_96, %c0_97, %c0_98] : memref<1x1x8x5x1xf32, #tpu.memory_space<vmem>>, vector<1x1x1x5x1xf32>
    %78 = vector.shape_cast %77 : vector<1x1x1x5x1xf32> to vector<5x1xf32>
    %79 = vector.broadcast %78 : vector<5x1xf32> to vector<5x128xf32>
    %80 = arith.mulf %76, %79 : vector<5x128xf32>
    %81 = arith.truncf %80 : vector<5x128xf32> to vector<5x128xbf16>
    %c0_99 = arith.constant 0 : index
    %c0_100 = arith.constant 0 : index
    %c4_101 = arith.constant 4 : index
    %c0_102 = arith.constant 0 : index
    %c0_103 = arith.constant 0 : index
    %82 = vector.load %arg8[%c0_99, %c0_100, %c4_101, %c0_102, %c0_103] : memref<1x1x8x5x128xbf16, #tpu.memory_space<vmem>>, vector<1x1x1x5x128xbf16>
    %83 = vector.shape_cast %82 : vector<1x1x1x5x128xbf16> to vector<5x128xbf16>
    %84 = vector.shape_cast %81 : vector<5x128xbf16> to vector<1x1x1x5x128xbf16>
    tpu.vector_store %arg8[%c0_99, %c0_100, %c4_101, %c0_102, %c0_103], %84 {strides = array<i32>} : memref<1x1x8x5x128xbf16, #tpu.memory_space<vmem>>, vector<1x1x1x5x128xbf16>,
    %c0_104 = arith.constant 0 : index
    %c0_105 = arith.constant 0 : index
    %c0_106 = arith.constant 0 : index
    %c5 = arith.constant 5 : index
    %c0_107 = arith.constant 0 : index
    %c0_108 = arith.constant 0 : index
    %85 = vector.load %arg4[%c0_104, %c0_105, %c0_106, %c5, %c0_107, %c0_108] : memref<1x1x1x8x5x27xbf16, #tpu.memory_space<vmem>>, vector<1x1x1x1x5x27xbf16>
    %86 = vector.shape_cast %85 : vector<1x1x1x1x5x27xbf16> to vector<5x27xbf16>
    %c0_109 = arith.constant 0 : index
    %c0_110 = arith.constant 0 : index
    %87 = vector.load %arg6[%c0_109, %c0_110] : memref<27x128xbf16, #tpu.memory_space<vmem>>, vector<27x128xbf16>
    %cst_111 = arith.constant dense<0.000000e+00> : vector<5x128xf32>
    %88 = tpu.matmul %86, %87, %cst_111 {dimension_numbers = #tpu.dot_dimension_numbers<[1], [0], [0], [1], [0, 0, 1, 1], [], []>} : vector<5x27xbf16>, vector<27x128xbf16>, vector<5x128xf32> -> vector<5x128xf32>
    %c0_112 = arith.constant 0 : index
    %c0_113 = arith.constant 0 : index
    %89 = vector.load %arg7[%c0_112, %c0_113] : memref<1x128xf32, #tpu.memory_space<vmem>>, vector<1x128xf32>
    %90 = vector.broadcast %89 : vector<1x128xf32> to vector<5x128xf32>
    %91 = arith.addf %88, %90 : vector<5x128xf32>
    %cst_114 = arith.constant 0.000000e+00 : f32
    %92 = vector.broadcast %cst_114 : f32 to vector<5x128xf32>
    %93 = arith.maximumf %91, %92 : vector<5x128xf32>
    %c0_115 = arith.constant 0 : index
    %c0_116 = arith.constant 0 : index
    %c5_117 = arith.constant 5 : index
    %c0_118 = arith.constant 0 : index
    %c0_119 = arith.constant 0 : index
    %94 = vector.load %arg5[%c0_115, %c0_116, %c5_117, %c0_118, %c0_119] : memref<1x1x8x5x1xf32, #tpu.memory_space<vmem>>, vector<1x1x1x5x1xf32>
    %95 = vector.shape_cast %94 : vector<1x1x1x5x1xf32> to vector<5x1xf32>
    %96 = vector.broadcast %95 : vector<5x1xf32> to vector<5x128xf32>
    %97 = arith.mulf %93, %96 : vector<5x128xf32>
    %98 = arith.truncf %97 : vector<5x128xf32> to vector<5x128xbf16>
    %c0_120 = arith.constant 0 : index
    %c0_121 = arith.constant 0 : index
    %c5_122 = arith.constant 5 : index
    %c0_123 = arith.constant 0 : index
    %c0_124 = arith.constant 0 : index
    %99 = vector.load %arg8[%c0_120, %c0_121, %c5_122, %c0_123, %c0_124] : memref<1x1x8x5x128xbf16, #tpu.memory_space<vmem>>, vector<1x1x1x5x128xbf16>
    %100 = vector.shape_cast %99 : vector<1x1x1x5x128xbf16> to vector<5x128xbf16>
    %101 = vector.shape_cast %98 : vector<5x128xbf16> to vector<1x1x1x5x128xbf16>
    tpu.vector_store %arg8[%c0_120, %c0_121, %c5_122, %c0_123, %c0_124], %101 {strides = array<i32>} : memref<1x1x8x5x128xbf16, #tpu.memory_space<vmem>>, vector<1x1x1x5x128xbf16>,
    %c0_125 = arith.constant 0 : index
    %c0_126 = arith.constant 0 : index
    %c0_127 = arith.constant 0 : index
    %c6 = arith.constant 6 : index
    %c0_128 = arith.constant 0 : index
    %c0_129 = arith.constant 0 : index
    %102 = vector.load %arg4[%c0_125, %c0_126, %c0_127, %c6, %c0_128, %c0_129] : memref<1x1x1x8x5x27xbf16, #tpu.memory_space<vmem>>, vector<1x1x1x1x5x27xbf16>
    %103 = vector.shape_cast %102 : vector<1x1x1x1x5x27xbf16> to vector<5x27xbf16>
    %c0_130 = arith.constant 0 : index
    %c0_131 = arith.constant 0 : index
    %104 = vector.load %arg6[%c0_130, %c0_131] : memref<27x128xbf16, #tpu.memory_space<vmem>>, vector<27x128xbf16>
    %cst_132 = arith.constant dense<0.000000e+00> : vector<5x128xf32>
    %105 = tpu.matmul %103, %104, %cst_132 {dimension_numbers = #tpu.dot_dimension_numbers<[1], [0], [0], [1], [0, 0, 1, 1], [], []>} : vector<5x27xbf16>, vector<27x128xbf16>, vector<5x128xf32> -> vector<5x128xf32>
    %c0_133 = arith.constant 0 : index
    %c0_134 = arith.constant 0 : index
    %106 = vector.load %arg7[%c0_133, %c0_134] : memref<1x128xf32, #tpu.memory_space<vmem>>, vector<1x128xf32>
    %107 = vector.broadcast %106 : vector<1x128xf32> to vector<5x128xf32>
    %108 = arith.addf %105, %107 : vector<5x128xf32>
    %cst_135 = arith.constant 0.000000e+00 : f32
    %109 = vector.broadcast %cst_135 : f32 to vector<5x128xf32>
    %110 = arith.maximumf %108, %109 : vector<5x128xf32>
    %c0_136 = arith.constant 0 : index
    %c0_137 = arith.constant 0 : index
    %c6_138 = arith.constant 6 : index
    %c0_139 = arith.constant 0 : index
    %c0_140 = arith.constant 0 : index
    %111 = vector.load %arg5[%c0_136, %c0_137, %c6_138, %c0_139, %c0_140] : memref<1x1x8x5x1xf32, #tpu.memory_space<vmem>>, vector<1x1x1x5x1xf32>
    %112 = vector.shape_cast %111 : vector<1x1x1x5x1xf32> to vector<5x1xf32>
    %113 = vector.broadcast %112 : vector<5x1xf32> to vector<5x128xf32>
    %114 = arith.mulf %110, %113 : vector<5x128xf32>
    %115 = arith.truncf %114 : vector<5x128xf32> to vector<5x128xbf16>
    %c0_141 = arith.constant 0 : index
    %c0_142 = arith.constant 0 : index
    %c6_143 = arith.constant 6 : index
    %c0_144 = arith.constant 0 : index
    %c0_145 = arith.constant 0 : index
    %116 = vector.load %arg8[%c0_141, %c0_142, %c6_143, %c0_144, %c0_145] : memref<1x1x8x5x128xbf16, #tpu.memory_space<vmem>>, vector<1x1x1x5x128xbf16>
    %117 = vector.shape_cast %116 : vector<1x1x1x5x128xbf16> to vector<5x128xbf16>
    %118 = vector.shape_cast %115 : vector<5x128xbf16> to vector<1x1x1x5x128xbf16>
    tpu.vector_store %arg8[%c0_141, %c0_142, %c6_143, %c0_144, %c0_145], %118 {strides = array<i32>} : memref<1x1x8x5x128xbf16, #tpu.memory_space<vmem>>, vector<1x1x1x5x128xbf16>,
    %c0_146 = arith.constant 0 : index
    %c0_147 = arith.constant 0 : index
    %c0_148 = arith.constant 0 : index
    %c7 = arith.constant 7 : index
    %c0_149 = arith.constant 0 : index
    %c0_150 = arith.constant 0 : index
    %119 = vector.load %arg4[%c0_146, %c0_147, %c0_148, %c7, %c0_149, %c0_150] : memref<1x1x1x8x5x27xbf16, #tpu.memory_space<vmem>>, vector<1x1x1x1x5x27xbf16>
    %120 = vector.shape_cast %119 : vector<1x1x1x1x5x27xbf16> to vector<5x27xbf16>
    %c0_151 = arith.constant 0 : index
    %c0_152 = arith.constant 0 : index
    %121 = vector.load %arg6[%c0_151, %c0_152] : memref<27x128xbf16, #tpu.memory_space<vmem>>, vector<27x128xbf16>
    %cst_153 = arith.constant dense<0.000000e+00> : vector<5x128xf32>
    %122 = tpu.matmul %120, %121, %cst_153 {dimension_numbers = #tpu.dot_dimension_numbers<[1], [0], [0], [1], [0, 0, 1, 1], [], []>} : vector<5x27xbf16>, vector<27x128xbf16>, vector<5x128xf32> -> vector<5x128xf32>
    %c0_154 = arith.constant 0 : index
    %c0_155 = arith.constant 0 : index
    %123 = vector.load %arg7[%c0_154, %c0_155] : memref<1x128xf32, #tpu.memory_space<vmem>>, vector<1x128xf32>
    %124 = vector.broadcast %123 : vector<1x128xf32> to vector<5x128xf32>
    %125 = arith.addf %122, %124 : vector<5x128xf32>
    %cst_156 = arith.constant 0.000000e+00 : f32
    %126 = vector.broadcast %cst_156 : f32 to vector<5x128xf32>
    %127 = arith.maximumf %125, %126 : vector<5x128xf32>
    %c0_157 = arith.constant 0 : index
    %c0_158 = arith.constant 0 : index
    %c7_159 = arith.constant 7 : index
    %c0_160 = arith.constant 0 : index
    %c0_161 = arith.constant 0 : index
    %128 = vector.load %arg5[%c0_157, %c0_158, %c7_159, %c0_160, %c0_161] : memref<1x1x8x5x1xf32, #tpu.memory_space<vmem>>, vector<1x1x1x5x1xf32>
    %129 = vector.shape_cast %128 : vector<1x1x1x5x1xf32> to vector<5x1xf32>
    %130 = vector.broadcast %129 : vector<5x1xf32> to vector<5x128xf32>
    %131 = arith.mulf %127, %130 : vector<5x128xf32>
    %132 = arith.truncf %131 : vector<5x128xf32> to vector<5x128xbf16>
    %c0_162 = arith.constant 0 : index
    %c0_163 = arith.constant 0 : index
    %c7_164 = arith.constant 7 : index
    %c0_165 = arith.constant 0 : index
    %c0_166 = arith.constant 0 : index
    %133 = vector.load %arg8[%c0_162, %c0_163, %c7_164, %c0_165, %c0_166] : memref<1x1x8x5x128xbf16, #tpu.memory_space<vmem>>, vector<1x1x1x5x128xbf16>
    %134 = vector.shape_cast %133 : vector<1x1x1x5x128xbf16> to vector<5x128xbf16>
    %135 = vector.shape_cast %132 : vector<5x128xbf16> to vector<1x1x1x5x128xbf16>
    tpu.vector_store %arg8[%c0_162, %c0_163, %c7_164, %c0_165, %c0_166], %135 {strides = array<i32>} : memref<1x1x8x5x128xbf16, #tpu.memory_space<vmem>>, vector<1x1x1x5x128xbf16>,
    return
  }
  func.func @transform_0(%arg0: i32, %arg1: i32, %arg2: i32, %arg3: i32) -> (i32, i32, i32, i32, i32, i32) {
    %c0_i32 = arith.constant 0 : i32
    %c0_i32_0 = arith.constant 0 : i32
    %c0_i32_1 = arith.constant 0 : i32
    return %arg0, %arg1, %arg2, %arg3, %c0_i32, %c0_i32_0 : i32, i32, i32, i32, i32, i32
  }
  func.func @transform_1(%arg0: i32, %arg1: i32, %arg2: i32, %arg3: i32) -> (i32, i32, i32, i32, i32) {
    %c0_i32 = arith.constant 0 : i32
    %c0_i32_0 = arith.constant 0 : i32
    %c0_i32_1 = arith.constant 0 : i32
    return %arg1, %arg2, %arg3, %c0_i32, %c0_i32_0 : i32, i32, i32, i32, i32
  }
  func.func @transform_2(%arg0: i32, %arg1: i32, %arg2: i32, %arg3: i32) -> (i32, i32) {
    %c0_i32 = arith.constant 0 : i32
    %c0_i32_0 = arith.constant 0 : i32
    %c0_i32_1 = arith.constant 0 : i32
    return %c0_i32, %c0_i32_0 : i32, i32
  }
  func.func @transform_3(%arg0: i32, %arg1: i32, %arg2: i32, %arg3: i32) -> (i32, i32) {
    %c0_i32 = arith.constant 0 : i32
    %c0_i32_0 = arith.constant 0 : i32
    %c0_i32_1 = arith.constant 0 : i32
    return %c0_i32, %c0_i32_0 : i32, i32
  }
  func.func @transform_4(%arg0: i32, %arg1: i32, %arg2: i32, %arg3: i32) -> (i32, i32, i32, i32, i32) {
    %c0_i32 = arith.constant 0 : i32
    %c0_i32_0 = arith.constant 0 : i32
    return %arg0, %arg2, %arg3, %c0_i32, %arg1 : i32, i32, i32, i32, i32
  }
}

</mosaic_0001>

<llo_original>
// kernel: tpu_custom_call.1
$region0: #{tpu_custom_call.1}
  #allocation0 [shape = 'u32[]', space=smem, size = 0x4, offset = 0x4, fixed_abs, tag = 'smem constant byte address 0x4 - core index']
  #allocation1 [shape = 'u32[72,128]{1,0:T(1,128)}', space=vmem, size = 0x9000, scoped, tag = 'internal scratch']
  %s0 = inlined_call_operand.vmem [shape: bf16[2,2,2,8,5,27], index: 0, kind: input, shape index: {}]
  %s1 = inlined_call_operand.vmem [shape: f32[2,2,8,5,1], index: 1, kind: input, shape index: {}]
  %s2 = inlined_call_operand.vmem [shape: bf16[27,128], index: 2, kind: input, shape index: {}]
  %s3 = inlined_call_operand.vmem [shape: f32[1,128], index: 3, kind: input, shape index: {}]
  %s4 = inlined_call_operand.vmem [shape: bf16[2,2,8,5,256], index: 4, kind: output, shape index: {}]
  %s5 = sld [smem:[#allocation0]]
  $region86: #{tpu_custom_call.1} parent=0
    _
  %s7 = ssub.s32 1, %s5
  %s8 = scalar_select 0, %s7, %s5
  $region1: #{tpu_custom_call.1} parent=0
    #allocation2 [shape = 'u8[32768]{0}', space=vmem, size = 0x8000, scoped, tag = 'output window, operand 0']
    loop: start=0, step=1, limit=10
    $region2: #{tpu_custom_call.1} parent=1 // loop_pre_header
      _
    $region3: #{tpu_custom_call.1} parent=1 // loop_header
      %s10 = sphi 0, %s14
      %p11 = scmp.ge.s32.totalorder %s10, 10
      %s17 = sphi 0, %s43
      %s18 = sphi 0, %s39
      %s19 = sphi 0, %s35
      %s20 = sphi 0, %s31
      %s21 = sphi 0, %s17
      %s22 = sphi 0, %s18
      %s23 = sphi 0, %s19
      %s24 = sphi 0, %s20
      %s25 = sphi 0, %s21
      %s26 = sphi 0, %s22
      %s27 = sphi 0, %s23
      %s28 = sphi 0, %s24
      %s52 = sphi 0, %s54
      %s55 = sphi 0, %s52
      %s56 = sphi 0, %s55
      %s72 = sphi 0, %s56
      %s82 = sphi 0, %s84
      %s85 = sphi 0, %s82
      %s86 = sphi 0, %s85
      %s102 = sphi 0, %s86
      %s106 = sphi 0, %s106
      %s108 = sphi 0, %s106
      %s109 = sphi 0, %s108
      %s123 = sphi 0, %s109
      %s127 = sphi 0, %s127
      %s129 = sphi 0, %s127
      %s130 = sphi 0, %s129
      %s144 = sphi 0, %s130
      %s156 = sphi 0, %s158
      %s159 = sphi 0, %s156
      %s160 = sphi 0, %s159
      %s176 = sphi 0, %s160
    $region4: #{tpu_custom_call.1} parent=1 // loop_header_branch
      %13 = sbr.rel (%p11) target = $region8
    $region5: #{tpu_custom_call.1} parent=1 // loop_body
      %s15 = ssub.s32 %s10, 1
      %s16 = ssub.s32 %s10, 2
      %s29 = sadd.s32 1, %s20
      %p30 = scmp.ge.s32.totalorder %s29, 1
      %s31 = scalar_select %p30, 0, %s29
      %s32 = sadd.s32 1, %s19
      %s33 = scalar_select %p30, %s32, %s19
      %p34 = scmp.ge.s32.totalorder %s33, 2
      %s35 = scalar_select %p34, 0, %s33
      %s36 = sadd.s32 1, %s18
      %s37 = scalar_select %p34, %s36, %s18
      %p38 = scmp.ge.s32.totalorder %s37, 2
      %s39 = scalar_select %p38, 0, %s37
      %s40 = sadd.s32 1, %s17
      %s41 = scalar_select %p38, %s40, %s17
      %p42 = scmp.ge.s32.totalorder %s41, 2
      %s43 = scalar_select %p42, 0, %s41
      %s44 = ssub.s32 %s17, %s43
      %s45 = ssub.s32 %s18, %s39
      %s46 = sor.u32 %s44, %s45
      %s47 = ssub.s32 %s19, %s35
      %s48 = sor.u32 %s46, %s47
      %s49 = ssub.s32 %s20, %s31
      %s50 = sor.u32 %s48, %s49
      %p51 = scmp.eq.s32.totalorder %s50, 0
      %s53 = sadd.s32 %s52, 1
      %s54 = scalar_select %p51, %s52, %s53
      %p57 = pneg %p51
      %p58 = scmp.eq.s32.totalorder %s10, 7
      %p59 = por %p57, %p58
      %p60 = scmp.ne.s32.totalorder %s52, %s55
      %p61 = scmp.eq.s32.totalorder %s10, 0
      %p62 = por %p60, %p61
      %p63 = scmp.ne.s32.totalorder %s52, %s55
      %p64 = scmp.eq.s32.totalorder %s15, 7
      %p65 = por %p63, %p64
      %p66 = scmp.ne.s32.totalorder %s55, %s56
      %p67 = scmp.eq.s32.totalorder %s15, 0
      %p68 = por %p66, %p67
      %p69 = scmp.ne.s32.totalorder %s55, %s56
      %p70 = scmp.eq.s32.totalorder %s16, 7
      %p71 = por %p69, %p70
      %p73 = scmp.ne.s32.totalorder %s56, %s72
      %p74 = scmp.eq.s32.totalorder %s16, 0
      %p75 = por %p73, %p74
      %s76 = ssub.s32 %s18, %s39
      %s77 = ssub.s32 %s19, %s35
      %s78 = sor.u32 %s76, %s77
      %s79 = ssub.s32 %s20, %s31
      %s80 = sor.u32 %s78, %s79
      %p81 = scmp.eq.s32.totalorder %s80, 0
      %s83 = sadd.s32 %s82, 1
      %s84 = scalar_select %p81, %s82, %s83
      %p87 = pneg %p81
      %p88 = scmp.eq.s32.totalorder %s10, 7
      %p89 = por %p87, %p88
      %p90 = scmp.ne.s32.totalorder %s82, %s85
      %p91 = scmp.eq.s32.totalorder %s10, 0
      %p92 = por %p90, %p91
      %p93 = scmp.ne.s32.totalorder %s82, %s85
      %p94 = scmp.eq.s32.totalorder %s15, 7
      %p95 = por %p93, %p94
      %p96 = scmp.ne.s32.totalorder %s85, %s86
      %p97 = scmp.eq.s32.totalorder %s15, 0
      %p98 = por %p96, %p97
      %p99 = scmp.ne.s32.totalorder %s85, %s86
      %p100 = scmp.eq.s32.totalorder %s16, 7
      %p101 = por %p99, %p100
      %p103 = scmp.ne.s32.totalorder %s86, %s102
      %p104 = scmp.eq.s32.totalorder %s16, 0
      %p105 = por %p103, %p104
      %s107 = sadd.s32 %s106, 1
      %p110 = scmp.eq.s32.totalorder %s10, 7
      %p111 = scmp.ne.s32.totalorder %s106, %s108
      %p112 = scmp.eq.s32.totalorder %s10, 0
      %p113 = por %p111, %p112
      %p114 = scmp.ne.s32.totalorder %s106, %s108
      %p115 = scmp.eq.s32.totalorder %s15, 7
      %p116 = por %p114, %p115
      %p117 = scmp.ne.s32.totalorder %s108, %s109
      %p118 = scmp.eq.s32.totalorder %s15, 0
      %p119 = por %p117, %p118
      %p120 = scmp.ne.s32.totalorder %s108, %s109
      %p121 = scmp.eq.s32.totalorder %s16, 7
      %p122 = por %p120, %p121
      %p124 = scmp.ne.s32.totalorder %s109, %s123
      %p125 = scmp.eq.s32.totalorder %s16, 0
      %p126 = por %p124, %p125
      %s128 = sadd.s32 %s127, 1
      %p131 = scmp.eq.s32.totalorder %s10, 7
      %p132 = scmp.ne.s32.totalorder %s127, %s129
      %p133 = scmp.eq.s32.totalorder %s10, 0
      %p134 = por %p132, %p133
      %p135 = scmp.ne.s32.totalorder %s127, %s129
      %p136 = scmp.eq.s32.totalorder %s15, 7
      %p137 = por %p135, %p136
      %p138 = scmp.ne.s32.totalorder %s129, %s130
      %p139 = scmp.eq.s32.totalorder %s15, 0
      %p140 = por %p138, %p139
      %p141 = scmp.ne.s32.totalorder %s129, %s130
      %p142 = scmp.eq.s32.totalorder %s16, 7
      %p143 = por %p141, %p142
      %p145 = scmp.ne.s32.totalorder %s130, %s144
      %p146 = scmp.eq.s32.totalorder %s16, 0
      %p147 = por %p145, %p146
      %s148 = ssub.s32 %s17, %s43
      %s149 = ssub.s32 %s19, %s35
      %s150 = sor.u32 %s148, %s149
      %s151 = ssub.s32 %s20, %s31
      %s152 = sor.u32 %s150, %s151
      %s153 = ssub.s32 %s18, %s39
      %s154 = sor.u32 %s152, %s153
      %p155 = scmp.eq.s32.totalorder %s154, 0
      %s157 = sadd.s32 %s156, 1
      %s158 = scalar_select %p155, %s156, %s157
      %p161 = pneg %p155
      %p162 = scmp.eq.s32.totalorder %s10, 7
      %p163 = por %p161, %p162
      %p164 = scmp.ne.s32.totalorder %s156, %s159
      %p165 = scmp.eq.s32.totalorder %s10, 0
      %p166 = por %p164, %p165
      %p167 = scmp.ne.s32.totalorder %s156, %s159
      %p168 = scmp.eq.s32.totalorder %s15, 7
      %p169 = por %p167, %p168
      %p170 = scmp.ne.s32.totalorder %s159, %s160
      %p171 = scmp.eq.s32.totalorder %s15, 0
      %p172 = por %p170, %p171
      %p173 = scmp.ne.s32.totalorder %s159, %s160
      %p174 = scmp.eq.s32.totalorder %s16, 7
      %p175 = por %p173, %p174
      %p177 = scmp.ne.s32.totalorder %s160, %s176
      %p178 = scmp.eq.s32.totalorder %s16, 0
      %p179 = por %p177, %p178
      %p180 = scmp.le.s32.totalorder 1, %s10
      %p181 = scmp.lt.s32.totalorder %s10, 9
      %p182 = pnand %p180, %p181
      %p183 = pneg %p182
      // Predicated region
      $region9: #{tpu_custom_call.1} parent=5 // pred_check
        _
      $region10: #{tpu_custom_call.1} parent=5 // pred_check_branch
        %185 = sbr.rel (%p182) target = $region12
      $region11: #{tpu_custom_call.1} parent=5 // pred_region
        %s186 = ssub.s32 %s10, 1
        // Predicated region
        $region13: #{tpu_custom_call.1} parent=11 // pred_check
          %p187 = pneg %p119
        $region14: #{tpu_custom_call.1} parent=11 // pred_check_branch
          %189 = sbr.rel (%p187) target = $region16
        $region15: #{tpu_custom_call.1} parent=11 // pred_region
          _
        $region16: #{tpu_custom_call.1} parent=11 // pred_fallthru
          _
        // Predicated region
        $region17: #{tpu_custom_call.1} parent=11 // pred_check
          %p190 = pneg %p140
        $region18: #{tpu_custom_call.1} parent=11 // pred_check_branch
          %192 = sbr.rel (%p190) target = $region20
        $region19: #{tpu_custom_call.1} parent=11 // pred_region
          _
        $region20: #{tpu_custom_call.1} parent=11 // pred_fallthru
          _
      $region12: #{tpu_custom_call.1} parent=5 // pred_fallthru
        _
      %p193 = scmp.lt.s32.totalorder %s10, 8
      // Predicated region
      $region21: #{tpu_custom_call.1} parent=5 // pred_check
        %p194 = pneg %p193
      $region22: #{tpu_custom_call.1} parent=5 // pred_check_branch
        %196 = sbr.rel (%p194) target = $region24
      $region23: #{tpu_custom_call.1} parent=5 // pred_region
        // Predicated region
        $region25: #{tpu_custom_call.1} parent=23 // pred_check
          %p197 = pneg %p62
        $region26: #{tpu_custom_call.1} parent=23 // pred_check_branch
          %199 = sbr.rel (%p197) target = $region28
        $region27: #{tpu_custom_call.1} parent=23 // pred_region
          %s200 = smul.u32 8, %s20
          %p201 = scmp.lt.s32.totalorder %s17, 1
          %s202 = scalar_select %p201, %s17, 1
          %p203 = scmp.lt.s32.totalorder %s18, 1
          %s204 = scalar_select %p203, %s18, 1
          %p205 = scmp.lt.s32.totalorder %s19, 1
          %s206 = scalar_select %p205, %s19, 1
          %p207 = scmp.lt.s32.totalorder %s200, 7
          %s208 = scalar_select %p207, %s200, 7
          %s209 = smul.addr %s206, 8
          %s210 = sadd.s32 %s208, %s209
          %s211 = smul.addr %s204, 16
          %s212 = sadd.s32 %s210, %s211
          %s213 = smul.addr %s202, 32
          %s214 = sadd.s32 %s212, %s213
          %s215 = smul.addr %s214, 4
          %s216 = scalar_lea.vmem %s0, %s215
          %s217 = smul.u32 8, %s20
        $region28: #{tpu_custom_call.1} parent=23 // pred_fallthru
          _
        // Predicated region
        $region29: #{tpu_custom_call.1} parent=23 // pred_check
          %p218 = pneg %p92
        $region30: #{tpu_custom_call.1} parent=23 // pred_check_branch
          %220 = sbr.rel (%p218) target = $region32
        $region31: #{tpu_custom_call.1} parent=23 // pred_region
          %s221 = smul.u32 8, %s20
          %p222 = scmp.lt.s32.totalorder %s18, 1
          %s223 = scalar_select %p222, %s18, 1
          %p224 = scmp.lt.s32.totalorder %s19, 1
          %s225 = scalar_select %p224, %s19, 1
          %p226 = scmp.lt.s32.totalorder %s221, 7
          %s227 = scalar_select %p226, %s221, 7
          %s228 = smul.addr %s225, 8
          %s229 = sadd.s32 %s227, %s228
          %s230 = smul.addr %s223, 16
          %s231 = sadd.s32 %s229, %s230
          %s232 = smul.addr %s231, 8
          %s233 = scalar_lea.vmem %s1, %s232
          %s234 = smul.u32 8, %s20
        $region32: #{tpu_custom_call.1} parent=23 // pred_fallthru
          _
      $region24: #{tpu_custom_call.1} parent=5 // pred_fallthru
        _
      %p235 = scmp.le.s32.totalorder 1, %s10
      %p236 = scmp.lt.s32.totalorder %s10, 9
      %p237 = pnand %p235, %p236
      %p238 = pneg %p237
      // Predicated region
      $region33: #{tpu_custom_call.1} parent=5 // pred_check
        _
      $region34: #{tpu_custom_call.1} parent=5 // pred_check_branch
        %240 = sbr.rel (%p237) target = $region36
      $region35: #{tpu_custom_call.1} parent=5 // pred_region
        %s241 = ssub.s32 %s10, 1
        %s242 = smul.u32 8, %s24
        %p243 = scmp.lt.s32.totalorder %s21, 1
        %s244 = scalar_select %p243, %s21, 1
        %p245 = scmp.lt.s32.totalorder %s22, 1
        %s246 = scalar_select %p245, %s22, 1
        %p247 = scmp.lt.s32.totalorder %s23, 1
        %s248 = scalar_select %p247, %s23, 1
        %p249 = scmp.lt.s32.totalorder %s242, 7
        %s250 = scalar_select %p249, %s242, 7
        %s251 = smul.addr %s248, 8
        %s252 = sadd.s32 %s250, %s251
        %s253 = smul.addr %s246, 16
        %s254 = sadd.s32 %s252, %s253
        %s255 = smul.addr %s244, 32
        %s256 = sadd.s32 %s254, %s255
        %s257 = smul.addr %s256, 4
        %s258 = scalar_lea.vmem %s0, %s257
        %p259 = pneg %p68
        %p260 = pneg %p65
        %s261 = smul.u32 8, %s24
        %p262 = scmp.lt.s32.totalorder %s22, 1
        %s263 = scalar_select %p262, %s22, 1
        %p264 = scmp.lt.s32.totalorder %s23, 1
        %s265 = scalar_select %p264, %s23, 1
        %p266 = scmp.lt.s32.totalorder %s261, 7
        %s267 = scalar_select %p266, %s261, 7
        %s268 = smul.addr %s265, 8
        %s269 = sadd.s32 %s267, %s268
        %s270 = smul.addr %s263, 16
        %s271 = sadd.s32 %s269, %s270
        %s272 = smul.addr %s271, 8
        %s273 = scalar_lea.vmem %s1, %s272
        %p274 = pneg %p98
        %p275 = pneg %p95
        %p276 = pneg %p119
        %p277 = pneg %p116
        %p278 = pneg %p140
        %p279 = pneg %p137
        %p280 = pneg %p172
        %p281 = pneg %p169
        %s282 = sand.u32 %s159, 1
        %s283 = sand.u32 %s159, 1
        %s284 = smul.addr %s283, 32
        %s285 = scalar_lea.vmem [#allocation2], %s284
        %s286 = smul.u32 8, %s24
        %p287 = scmp.lt.s32.totalorder %s21, 1
        %s288 = scalar_select %p287, %s21, 1
        %p289 = scmp.lt.s32.totalorder %s22, 1
        %s290 = scalar_select %p289, %s22, 1
        %p291 = scmp.lt.s32.totalorder %s23, 1
        %s292 = scalar_select %p291, %s23, 1
        %p293 = scmp.lt.s32.totalorder %s286, 7
        %s294 = scalar_select %p293, %s286, 7
        %s295 = smul.addr %s292, 8
        %s296 = sadd.s32 %s294, %s295
        %s297 = smul.addr %s290, 16
        %s298 = sadd.s32 %s296, %s297
        %s299 = smul.addr %s288, 32
        %s300 = sadd.s32 %s298, %s299
        %s301 = smul.addr %s300, 4
        %s302 = scalar_lea.vmem %s0, %s301
        %s303 = smul.u32 8, %s24
        %s304 = smul.u32 8, %s24
        %p305 = scmp.lt.s32.totalorder %s22, 1
        %s306 = scalar_select %p305, %s22, 1
        %p307 = scmp.lt.s32.totalorder %s23, 1
        %s308 = scalar_select %p307, %s23, 1
        %p309 = scmp.lt.s32.totalorder %s304, 7
        %s310 = scalar_select %p309, %s304, 7
        %s311 = smul.addr %s308, 8
        %s312 = sadd.s32 %s310, %s311
        %s313 = smul.addr %s306, 16
        %s314 = sadd.s32 %s312, %s313
        %s315 = smul.addr %s314, 8
        %s316 = scalar_lea.vmem %s1, %s315
        %s317 = smul.u32 8, %s24
        %s318 = smul.u32 8, %s24
        %v320 = vld [vmem:[%s302] sm:$0x7]
        %v321 = vld [vmem:[%s2] sm:$0xf]
        %v322 = vld [vmem:[%s2 + $0x4] sm:$0xf]
        %v323 = vld [vmem:[%s2 + $0x8] sm:$0xf]
        %v324 = vld [vmem:[%s2 + $0xc] sm:$0x3]
        %v325 = vld [vmem:[%s3] sm:$0x1]
        %v327 = vperm.slane %v325, 0
        %v333 = vunpack.c.l.b16 %v321
        %v334 = vunpack.c.l.b16 %v322
        %v335 = vunpack.c.l.b16 %v323
        %v336 = vunpack.c.l.b16 %v324
        %v337 = vpack.c.b16 %v334, %v333
        %v338 = vpack.c.b16 %v336, %v335
        %vm340 = vcmask 220160
        %v342 = vsel %vm340, %v320, 0
        %vm344 = vcmask 1044480
        %vm345 = vcmask 1045504
        %v346 = vsel %vm344, 4294967295, 65535
        %v347 = vsel %vm345, %v346, 0
        %v349 = vand.u32 %v338, %v347
        %351 = vmatpush.bf16.msra.mxu0 0
        %352 = vmatpush.bf16.msra.mxu0 0
        %353 = vmatpush.bf16.msra.mxu0 0
        %354 = vmatpush.bf16.msra.mxu0 0
        %355 = vmatpush.bf16.msra.mxu0 0
        %356 = vmatpush.bf16.msra.mxu0 0
        %357 = vmatpush.bf16.msra.mxu0 %v349
        %358 = vmatpush.bf16.msra.mxu0 %v337
        %359 = vmatmul.bf16.gmra.mxu0 %v342
        %v360 = vpop.f32.mrf.mxu0
        %v361 = vadd.f32 %v327, %v360
        %v362 = vpop.f32.mrf.mxu0
        %363 = vdwg.mxu0
        %v364 = vmax.f32 %v361, 0.0
        %v365 = vld [vmem:[%s316] sm:$0x1f]
        %367 = vset.pattern.permute.xlu0 0
        %368 = vperm.xlu0 %367, %v365
        %v369 = vpop.permute.xlu0 %368
        %v371 = vmul.f32 %v364, %v369
        %v372 = vpack.c.bf16 %v371, %v371
        %vm373 = vcmask 1042432
        %vm374 = vsmask.f32 2304
        %vm375 = vmand %vm373, %vm374
        %v376 = vld [vmem:[%s285] sm:$0x7]
        %v377 = vsel %vm375, %v372, %v376
        %378 = vst [vmem:[%s285] sm:$0x7] %v377
        %s379 = scalar_lea.vmem %s302, 4
        %v380 = vld [vmem:[%s379] sm:$0x7]
        %v381 = vld [vmem:[%s2] sm:$0xf]
        %v382 = vld [vmem:[%s2 + $0x4] sm:$0xf]
        %v383 = vld [vmem:[%s2 + $0x8] sm:$0xf]
        %v384 = vld [vmem:[%s2 + $0xc] sm:$0x3]
        %v385 = vld [vmem:[%s3] sm:$0x1]
        %v387 = vperm.slane %v385, 0
        %v393 = vunpack.c.l.b16 %v381
        %v394 = vunpack.c.l.b16 %v382
        %v395 = vunpack.c.l.b16 %v383
        %v396 = vunpack.c.l.b16 %v384
        %v397 = vpack.c.b16 %v394, %v393
        %v398 = vpack.c.b16 %v396, %v395
        %v401 = vsel %vm340, %v380, 0
        %v404 = vand.u32 %v398, %v347
        %406 = vmatpush.bf16.msra.mxu0 0
        %407 = vmatpush.bf16.msra.mxu0 0
        %408 = vmatpush.bf16.msra.mxu0 0
        %409 = vmatpush.bf16.msra.mxu0 0
        %410 = vmatpush.bf16.msra.mxu0 0
        %411 = vmatpush.bf16.msra.mxu0 0
        %412 = vmatpush.bf16.msra.mxu0 %v404
        %413 = vmatpush.bf16.msra.mxu0 %v397
        %414 = vmatmul.bf16.gmra.mxu0 %v401
        %v415 = vpop.f32.mrf.mxu0
        %v416 = vadd.f32 %v387, %v415
        %v417 = vpop.f32.mrf.mxu0
        %418 = vdwg.mxu0
        %v419 = vmax.f32 %v416, 0.0
        %s420 = scalar_lea.vmem %s316, 8
        %v421 = vld [vmem:[%s420] sm:$0x1f]
        %423 = vset.pattern.permute.xlu0 0
        %424 = vperm.xlu0 %423, %v421
        %v425 = vpop.permute.xlu0 %424
        %v427 = vmul.f32 %v419, %v425
        %v428 = vpack.c.bf16 %v427, %v427
        %s429 = scalar_lea.vmem %s285, 4 [#allocation2]
        %v430 = vld [vmem:[%s429] sm:$0x7]
        %v431 = vsel %vm375, %v428, %v430
        %432 = vst [vmem:[%s429] sm:$0x7] %v431
        %s433 = scalar_lea.vmem %s302, 8
        %v434 = vld [vmem:[%s433] sm:$0x7]
        %v435 = vld [vmem:[%s2] sm:$0xf]
        %v436 = vld [vmem:[%s2 + $0x4] sm:$0xf]
        %v437 = vld [vmem:[%s2 + $0x8] sm:$0xf]
        %v438 = vld [vmem:[%s2 + $0xc] sm:$0x3]
        %v439 = vld [vmem:[%s3] sm:$0x1]
        %v441 = vperm.slane %v439, 0
        %v447 = vunpack.c.l.b16 %v435
        %v448 = vunpack.c.l.b16 %v436
        %v449 = vunpack.c.l.b16 %v437
        %v450 = vunpack.c.l.b16 %v438
        %v451 = vpack.c.b16 %v448, %v447
        %v452 = vpack.c.b16 %v450, %v449
        %v455 = vsel %vm340, %v434, 0
        %v458 = vand.u32 %v452, %v347
        %460 = vmatpush.bf16.msra.mxu0 0
        %461 = vmatpush.bf16.msra.mxu0 0
        %462 = vmatpush.bf16.msra.mxu0 0
        %463 = vmatpush.bf16.msra.mxu0 0
        %464 = vmatpush.bf16.msra.mxu0 0
        %465 = vmatpush.bf16.msra.mxu0 0
        %466 = vmatpush.bf16.msra.mxu0 %v458
        %467 = vmatpush.bf16.msra.mxu0 %v451
        %468 = vmatmul.bf16.gmra.mxu0 %v455
        %v469 = vpop.f32.mrf.mxu0
        %v470 = vadd.f32 %v441, %v469
        %v471 = vpop.f32.mrf.mxu0
        %472 = vdwg.mxu0
        %v473 = vmax.f32 %v470, 0.0
        %s474 = scalar_lea.vmem %s316, 16
        %v475 = vld [vmem:[%s474] sm:$0x1f]
        %477 = vset.pattern.permute.xlu0 0
        %478 = vperm.xlu0 %477, %v475
        %v479 = vpop.permute.xlu0 %478
        %v481 = vmul.f32 %v473, %v479
        %v482 = vpack.c.bf16 %v481, %v481
        %s483 = scalar_lea.vmem %s285, 8 [#allocation2]
        %v484 = vld [vmem:[%s483] sm:$0x7]
        %v485 = vsel %vm375, %v482, %v484
        %486 = vst [vmem:[%s483] sm:$0x7] %v485
        %s487 = scalar_lea.vmem %s302, 12
        %v488 = vld [vmem:[%s487] sm:$0x7]
        %v489 = vld [vmem:[%s2] sm:$0xf]
        %v490 = vld [vmem:[%s2 + $0x4] sm:$0xf]
        %v491 = vld [vmem:[%s2 + $0x8] sm:$0xf]
        %v492 = vld [vmem:[%s2 + $0xc] sm:$0x3]
        %v493 = vld [vmem:[%s3] sm:$0x1]
        %v495 = vperm.slane %v493, 0
        %v501 = vunpack.c.l.b16 %v489
        %v502 = vunpack.c.l.b16 %v490
        %v503 = vunpack.c.l.b16 %v491
        %v504 = vunpack.c.l.b16 %v492
        %v505 = vpack.c.b16 %v502, %v501
        %v506 = vpack.c.b16 %v504, %v503
        %v509 = vsel %vm340, %v488, 0
        %v512 = vand.u32 %v506, %v347
        %514 = vmatpush.bf16.msra.mxu0 0
        %515 = vmatpush.bf16.msra.mxu0 0
        %516 = vmatpush.bf16.msra.mxu0 0
        %517 = vmatpush.bf16.msra.mxu0 0
        %518 = vmatpush.bf16.msra.mxu0 0
        %519 = vmatpush.bf16.msra.mxu0 0
        %520 = vmatpush.bf16.msra.mxu0 %v512
        %521 = vmatpush.bf16.msra.mxu0 %v505
        %522 = vmatmul.bf16.gmra.mxu0 %v509
        %v523 = vpop.f32.mrf.mxu0
        %v524 = vadd.f32 %v495, %v523
        %v525 = vpop.f32.mrf.mxu0
        %526 = vdwg.mxu0
        %v527 = vmax.f32 %v524, 0.0
        %s528 = scalar_lea.vmem %s316, 24
        %v529 = vld [vmem:[%s528] sm:$0x1f]
        %531 = vset.pattern.permute.xlu0 0
        %532 = vperm.xlu0 %531, %v529
        %v533 = vpop.permute.xlu0 %532
        %v535 = vmul.f32 %v527, %v533
        %v536 = vpack.c.bf16 %v535, %v535
        %s537 = scalar_lea.vmem %s285, 12 [#allocation2]
        %v538 = vld [vmem:[%s537] sm:$0x7]
        %v539 = vsel %vm375, %v536, %v538
        %540 = vst [vmem:[%s537] sm:$0x7] %v539
        %s541 = scalar_lea.vmem %s302, 16
        %v542 = vld [vmem:[%s541] sm:$0x7]
        %v543 = vld [vmem:[%s2] sm:$0xf]
        %v544 = vld [vmem:[%s2 + $0x4] sm:$0xf]
        %v545 = vld [vmem:[%s2 + $0x8] sm:$0xf]
        %v546 = vld [vmem:[%s2 + $0xc] sm:$0x3]
        %v547 = vld [vmem:[%s3] sm:$0x1]
        %v549 = vperm.slane %v547, 0
        %v555 = vunpack.c.l.b16 %v543
        %v556 = vunpack.c.l.b16 %v544
        %v557 = vunpack.c.l.b16 %v545
        %v558 = vunpack.c.l.b16 %v546
        %v559 = vpack.c.b16 %v556, %v555
        %v560 = vpack.c.b16 %v558, %v557
        %v563 = vsel %vm340, %v542, 0
        %v566 = vand.u32 %v560, %v347
        %568 = vmatpush.bf16.msra.mxu0 0
        %569 = vmatpush.bf16.msra.mxu0 0
        %570 = vmatpush.bf16.msra.mxu0 0
        %571 = vmatpush.bf16.msra.mxu0 0
        %572 = vmatpush.bf16.msra.mxu0 0
        %573 = vmatpush.bf16.msra.mxu0 0
        %574 = vmatpush.bf16.msra.mxu0 %v566
        %575 = vmatpush.bf16.msra.mxu0 %v559
        %576 = vmatmul.bf16.gmra.mxu0 %v563
        %v577 = vpop.f32.mrf.mxu0
        %v578 = vadd.f32 %v549, %v577
        %v579 = vpop.f32.mrf.mxu0
        %580 = vdwg.mxu0
        %v581 = vmax.f32 %v578, 0.0
        %s582 = scalar_lea.vmem %s316, 32
        %v583 = vld [vmem:[%s582] sm:$0x1f]
        %585 = vset.pattern.permute.xlu0 0
        %586 = vperm.xlu0 %585, %v583
        %v587 = vpop.permute.xlu0 %586
        %v589 = vmul.f32 %v581, %v587
        %v590 = vpack.c.bf16 %v589, %v589
        %s591 = scalar_lea.vmem %s285, 16 [#allocation2]
        %v592 = vld [vmem:[%s591] sm:$0x7]
        %v593 = vsel %vm375, %v590, %v592
        %594 = vst [vmem:[%s591] sm:$0x7] %v593
        %s595 = scalar_lea.vmem %s302, 20
        %v596 = vld [vmem:[%s595] sm:$0x7]
        %v597 = vld [vmem:[%s2] sm:$0xf]
        %v598 = vld [vmem:[%s2 + $0x4] sm:$0xf]
        %v599 = vld [vmem:[%s2 + $0x8] sm:$0xf]
        %v600 = vld [vmem:[%s2 + $0xc] sm:$0x3]
        %v601 = vld [vmem:[%s3] sm:$0x1]
        %v603 = vperm.slane %v601, 0
        %v609 = vunpack.c.l.b16 %v597
        %v610 = vunpack.c.l.b16 %v598
        %v611 = vunpack.c.l.b16 %v599
        %v612 = vunpack.c.l.b16 %v600
        %v613 = vpack.c.b16 %v610, %v609
        %v614 = vpack.c.b16 %v612, %v611
        %v617 = vsel %vm340, %v596, 0
        %v620 = vand.u32 %v614, %v347
        %622 = vmatpush.bf16.msra.mxu0 0
        %623 = vmatpush.bf16.msra.mxu0 0
        %624 = vmatpush.bf16.msra.mxu0 0
        %625 = vmatpush.bf16.msra.mxu0 0
        %626 = vmatpush.bf16.msra.mxu0 0
        %627 = vmatpush.bf16.msra.mxu0 0
        %628 = vmatpush.bf16.msra.mxu0 %v620
        %629 = vmatpush.bf16.msra.mxu0 %v613
        %630 = vmatmul.bf16.gmra.mxu0 %v617
        %v631 = vpop.f32.mrf.mxu0
        %v632 = vadd.f32 %v603, %v631
        %v633 = vpop.f32.mrf.mxu0
        %634 = vdwg.mxu0
        %v635 = vmax.f32 %v632, 0.0
        %s636 = scalar_lea.vmem %s316, 40
        %v637 = vld [vmem:[%s636] sm:$0x1f]
        %639 = vset.pattern.permute.xlu0 0
        %640 = vperm.xlu0 %639, %v637
        %v641 = vpop.permute.xlu0 %640
        %v643 = vmul.f32 %v635, %v641
        %v644 = vpack.c.bf16 %v643, %v643
        %s645 = scalar_lea.vmem %s285, 20 [#allocation2]
        %v646 = vld [vmem:[%s645] sm:$0x7]
        %v647 = vsel %vm375, %v644, %v646
        %648 = vst [vmem:[%s645] sm:$0x7] %v647
        %s649 = scalar_lea.vmem %s302, 24
        %v650 = vld [vmem:[%s649] sm:$0x7]
        %v651 = vld [vmem:[%s2] sm:$0xf]
        %v652 = vld [vmem:[%s2 + $0x4] sm:$0xf]
        %v653 = vld [vmem:[%s2 + $0x8] sm:$0xf]
        %v654 = vld [vmem:[%s2 + $0xc] sm:$0x3]
        %v655 = vld [vmem:[%s3] sm:$0x1]
        %v657 = vperm.slane %v655, 0
        %v663 = vunpack.c.l.b16 %v651
        %v664 = vunpack.c.l.b16 %v652
        %v665 = vunpack.c.l.b16 %v653
        %v666 = vunpack.c.l.b16 %v654
        %v667 = vpack.c.b16 %v664, %v663
        %v668 = vpack.c.b16 %v666, %v665
        %v671 = vsel %vm340, %v650, 0
        %v674 = vand.u32 %v668, %v347
        %676 = vmatpush.bf16.msra.mxu0 0
        %677 = vmatpush.bf16.msra.mxu0 0
        %678 = vmatpush.bf16.msra.mxu0 0
        %679 = vmatpush.bf16.msra.mxu0 0
        %680 = vmatpush.bf16.msra.mxu0 0
        %681 = vmatpush.bf16.msra.mxu0 0
        %682 = vmatpush.bf16.msra.mxu0 %v674
        %683 = vmatpush.bf16.msra.mxu0 %v667
        %684 = vmatmul.bf16.gmra.mxu0 %v671
        %v685 = vpop.f32.mrf.mxu0
        %v686 = vadd.f32 %v657, %v685
        %v687 = vpop.f32.mrf.mxu0
        %688 = vdwg.mxu0
        %v689 = vmax.f32 %v686, 0.0
        %s690 = scalar_lea.vmem %s316, 48
        %v691 = vld [vmem:[%s690] sm:$0x1f]
        %693 = vset.pattern.permute.xlu0 0
        %694 = vperm.xlu0 %693, %v691
        %v695 = vpop.permute.xlu0 %694
        %v697 = vmul.f32 %v689, %v695
        %v698 = vpack.c.bf16 %v697, %v697
        %s699 = scalar_lea.vmem %s285, 24 [#allocation2]
        %v700 = vld [vmem:[%s699] sm:$0x7]
        %v701 = vsel %vm375, %v698, %v700
        %702 = vst [vmem:[%s699] sm:$0x7] %v701
        %s703 = scalar_lea.vmem %s302, 28
        %v704 = vld [vmem:[%s703] sm:$0x7]
        %v705 = vld [vmem:[%s2] sm:$0xf]
        %v706 = vld [vmem:[%s2 + $0x4] sm:$0xf]
        %v707 = vld [vmem:[%s2 + $0x8] sm:$0xf]
        %v708 = vld [vmem:[%s2 + $0xc] sm:$0x3]
        %v709 = vld [vmem:[%s3] sm:$0x1]
        %v711 = vperm.slane %v709, 0
        %v717 = vunpack.c.l.b16 %v705
        %v718 = vunpack.c.l.b16 %v706
        %v719 = vunpack.c.l.b16 %v707
        %v720 = vunpack.c.l.b16 %v708
        %v721 = vpack.c.b16 %v718, %v717
        %v722 = vpack.c.b16 %v720, %v719
        %v725 = vsel %vm340, %v704, 0
        %v728 = vand.u32 %v722, %v347
        %730 = vmatpush.bf16.msra.mxu0 0
        %731 = vmatpush.bf16.msra.mxu0 0
        %732 = vmatpush.bf16.msra.mxu0 0
        %733 = vmatpush.bf16.msra.mxu0 0
        %734 = vmatpush.bf16.msra.mxu0 0
        %735 = vmatpush.bf16.msra.mxu0 0
        %736 = vmatpush.bf16.msra.mxu0 %v728
        %737 = vmatpush.bf16.msra.mxu0 %v721
        %738 = vmatmul.bf16.gmra.mxu0 %v725
        %v739 = vpop.f32.mrf.mxu0
        %v740 = vadd.f32 %v711, %v739
        %v741 = vpop.f32.mrf.mxu0
        %742 = vdwg.mxu0
        %v743 = vmax.f32 %v740, 0.0
        %s744 = scalar_lea.vmem %s316, 56
        %v745 = vld [vmem:[%s744] sm:$0x1f]
        %747 = vset.pattern.permute.xlu0 0
        %748 = vperm.xlu0 %747, %v745
        %v749 = vpop.permute.xlu0 %748
        %v751 = vmul.f32 %v743, %v749
        %v752 = vpack.c.bf16 %v751, %v751
        %s753 = scalar_lea.vmem %s285, 28 [#allocation2]
        %v754 = vld [vmem:[%s753] sm:$0x7]
        %v755 = vsel %vm375, %v752, %v754
        %756 = vst [vmem:[%s753] sm:$0x7] %v755
        %s757 = sand.u32 %s159, 1
        %s758 = sand.u32 %s159, 1
        %s759 = smul.addr %s758, 32
        %s760 = scalar_lea.vmem [#allocation2], %s759
        // Predicated region
        $region37: #{tpu_custom_call.1} parent=35 // pred_check
          %p761 = pneg %p169
        $region38: #{tpu_custom_call.1} parent=35 // pred_check_branch
          %763 = sbr.rel (%p761) target = $region40
        $region39: #{tpu_custom_call.1} parent=35 // pred_region
          %s764 = smul.u32 8, %s24
          %s765 = smul.addr %s764, 2
          %s766 = sadd.s32 %s22, %s765
          %s767 = smul.addr %s23, 16
          %s768 = sadd.s32 %s766, %s767
          %s769 = smul.addr %s21, 32
          %s770 = sadd.s32 %s768, %s769
          %s771 = smul.addr %s770, 4
          %s772 = scalar_lea.vmem %s4, %s771
          // Predicated region
          $region41: #{tpu_custom_call.1} parent=39 // pred_check
            _
          $region42: #{tpu_custom_call.1} parent=39 // pred_check_branch
            %774 = sbr.rel (0) target = $region44
          $region43: #{tpu_custom_call.1} parent=39 // pred_region
            // Predicated region
            $region45: #{tpu_custom_call.1} parent=43 // pred_check
              _
            $region46: #{tpu_custom_call.1} parent=43 // pred_check_branch
              %776 = sbr.rel target = $region48
            $region47: #{tpu_custom_call.1} parent=43 // pred_region
              // Predicated region
              $region60: #{tpu_custom_call.1} parent=47 // pred_check
                _
              $region61: #{tpu_custom_call.1} parent=47 // pred_check_branch
                %806 = sbr.rel (0) target = $region63
              $region62: #{tpu_custom_call.1} parent=47 // pred_region
                loop: start=0, step=1, limit=1
                $region64: #{tpu_custom_call.1} parent=62 // loop_pre_header
                  _
                $region65: #{tpu_custom_call.1} parent=62 // loop_header
                  %s808 = sphi 0, %s812
                  %p809 = scmp.ge.s32.totalorder %s808, 1
                  %s813 = sphi %s760, %s760
                  %s814 = sphi %s772, %s772
                $region66: #{tpu_custom_call.1} parent=62 // loop_header_branch
                  %811 = sbr.rel (%p809) target = $region70
                $region67: #{tpu_custom_call.1} parent=62 // loop_body
                  _
                $region68: #{tpu_custom_call.1} parent=62 // loop_footer
                  %s812 = sadd.s32 1, %s808
                $region69: #{tpu_custom_call.1} parent=62 // loop_footer_branch
                  %807 = sbr.rel target = $region65
                $region70: #{tpu_custom_call.1} parent=62 // loop_exit
                  _
                %s816 = ssub.s32 16, 1
                loop: start=0, step=1, limit=1
                $region71: #{tpu_custom_call.1} parent=62 // loop_pre_header
                  _
                $region72: #{tpu_custom_call.1} parent=62 // loop_header
                  %s818 = sphi 0, %s822
                  %p819 = scmp.ge.s32.totalorder %s818, 1
                  %s823 = sphi %s760, %s760
                  %s824 = sphi %s772, %s772
                $region73: #{tpu_custom_call.1} parent=62 // loop_header_branch
                  %821 = sbr.rel (%p819) target = $region77
                $region74: #{tpu_custom_call.1} parent=62 // loop_body
                  %v825 = vld [vmem:[%s823] sm:%s816]
                  %826 = vst [vmem:[%s824] sm:%s816] %v825
                  %v827 = vld [vmem:[%s823 + $0x4] sm:%s816]
                  %828 = vst [vmem:[%s824 + $0x8] sm:%s816] %v827
                  %v829 = vld [vmem:[%s823 + $0x8] sm:%s816]
                  %830 = vst [vmem:[%s824 + $0x10] sm:%s816] %v829
                  %v831 = vld [vmem:[%s823 + $0xc] sm:%s816]
                  %832 = vst [vmem:[%s824 + $0x18] sm:%s816] %v831
                  %v833 = vld [vmem:[%s823 + $0x10] sm:%s816]
                  %834 = vst [vmem:[%s824 + $0x20] sm:%s816] %v833
                  %v835 = vld [vmem:[%s823 + $0x14] sm:%s816]
                  %836 = vst [vmem:[%s824 + $0x28] sm:%s816] %v835
                  %v837 = vld [vmem:[%s823 + $0x18] sm:%s816]
                  %838 = vst [vmem:[%s824 + $0x30] sm:%s816] %v837
                  %v839 = vld [vmem:[%s823 + $0x1c] sm:%s816]
                  %840 = vst [vmem:[%s824 + $0x38] sm:%s816] %v839
                $region75: #{tpu_custom_call.1} parent=62 // loop_footer
                  %s822 = sadd.s32 1, %s818
                $region76: #{tpu_custom_call.1} parent=62 // loop_footer_branch
                  %817 = sbr.rel target = $region72
                $region77: #{tpu_custom_call.1} parent=62 // loop_exit
                  _
              $region63: #{tpu_custom_call.1} parent=47 // pred_fallthru
                _
            $region48: #{tpu_custom_call.1} parent=43 // pred_fallthru
              _
            // Predicated region
            $region49: #{tpu_custom_call.1} parent=43 // pred_check
              _
            $region50: #{tpu_custom_call.1} parent=43 // pred_check_branch
              %778 = sbr.rel (0) target = $region52
            $region51: #{tpu_custom_call.1} parent=43 // pred_region
              %s780 = ssub.s32 16, 1
              loop: start=0, step=1, limit=1
              $region53: #{tpu_custom_call.1} parent=51 // loop_pre_header
                _
              $region54: #{tpu_custom_call.1} parent=51 // loop_header
                %s782 = sphi 0, %s786
                %p783 = scmp.ge.s32.totalorder %s782, 1
                %s787 = sphi %s760, %s760
                %s788 = sphi %s772, %s772
              $region55: #{tpu_custom_call.1} parent=51 // loop_header_branch
                %785 = sbr.rel (%p783) target = $region59
              $region56: #{tpu_custom_call.1} parent=51 // loop_body
                %v789 = vld [vmem:[%s787] sm:%s780]
                %790 = vst [vmem:[%s788] sm:%s780] %v789
                %v791 = vld [vmem:[%s787 + $0x4] sm:%s780]
                %792 = vst [vmem:[%s788 + $0x8] sm:%s780] %v791
                %v793 = vld [vmem:[%s787 + $0x8] sm:%s780]
                %794 = vst [vmem:[%s788 + $0x10] sm:%s780] %v793
                %v795 = vld [vmem:[%s787 + $0xc] sm:%s780]
                %796 = vst [vmem:[%s788 + $0x18] sm:%s780] %v795
                %v797 = vld [vmem:[%s787 + $0x10] sm:%s780]
                %798 = vst [vmem:[%s788 + $0x20] sm:%s780] %v797
                %v799 = vld [vmem:[%s787 + $0x14] sm:%s780]
                %800 = vst [vmem:[%s788 + $0x28] sm:%s780] %v799
                %v801 = vld [vmem:[%s787 + $0x18] sm:%s780]
                %802 = vst [vmem:[%s788 + $0x30] sm:%s780] %v801
                %v803 = vld [vmem:[%s787 + $0x1c] sm:%s780]
                %804 = vst [vmem:[%s788 + $0x38] sm:%s780] %v803
              $region57: #{tpu_custom_call.1} parent=51 // loop_footer
                %s786 = sadd.s32 1, %s782
              $region58: #{tpu_custom_call.1} parent=51 // loop_footer_branch
                %781 = sbr.rel target = $region54
              $region59: #{tpu_custom_call.1} parent=51 // loop_exit
                _
            $region52: #{tpu_custom_call.1} parent=43 // pred_fallthru
              _
          $region44: #{tpu_custom_call.1} parent=39 // pred_fallthru
            _
          %841 = vnop
        $region40: #{tpu_custom_call.1} parent=35 // pred_fallthru
          _
      $region36: #{tpu_custom_call.1} parent=5 // pred_fallthru
        _
      %p842 = scmp.le.s32.totalorder 2, %s10
      // Predicated region
      $region78: #{tpu_custom_call.1} parent=5 // pred_check
        %p843 = pneg %p842
      $region79: #{tpu_custom_call.1} parent=5 // pred_check_branch
        %845 = sbr.rel (%p843) target = $region81
      $region80: #{tpu_custom_call.1} parent=5 // pred_region
        %s846 = ssub.s32 %s10, 2
        // Predicated region
        $region82: #{tpu_custom_call.1} parent=80 // pred_check
          %p847 = pneg %p175
        $region83: #{tpu_custom_call.1} parent=80 // pred_check_branch
          %849 = sbr.rel (%p847) target = $region85
        $region84: #{tpu_custom_call.1} parent=80 // pred_region
          %s850 = sand.u32 %s160, 1
          %s851 = sand.u32 %s160, 1
          %s852 = smul.addr %s851, 32
          %s853 = scalar_lea.vmem [#allocation2], %s852
        $region85: #{tpu_custom_call.1} parent=80 // pred_fallthru
          _
      $region81: #{tpu_custom_call.1} parent=5 // pred_fallthru
        _
    $region6: #{tpu_custom_call.1} parent=1 // loop_footer
      %s14 = sadd.s32 1, %s10
    $region7: #{tpu_custom_call.1} parent=1 // loop_footer_branch
      %9 = sbr.rel target = $region3
    $region8: #{tpu_custom_call.1} parent=1 // loop_exit
      _

</llo_original>
